<compile_context>
chip_gen: v7x
topology: tpu7x:2x2x1
jax: 0.10.0
libtpu: 0.0.40
codegen_flags: <defaults>
</compile_context>

<pallas_src>
import math
import numpy as np
import jax
import jax.numpy as jnp
from jax import lax
from jax.experimental import pallas as pl
from jax.experimental.pallas import tpu as pltpu

# ----------------------------- model hyper-params -----------------------------
HIDDEN_SIZE = 32
HIDDEN_LAYERS = 3
EMB_SIZE = 16               # per positional embedding
HALF = EMB_SIZE // 2
CONCAT_SIZE = 3 * EMB_SIZE  # x1_emb + x2_emb + t_emb = 48
OUT_SIZE = 2
NUM_TIMESTEPS = 5
INPUT_SCALE = 25.0
TIME_SCALE = 1.0

APPROX_GELU = False  # tanh-approx GELU would use the otherwise-idle EUP slot but breaks
                     # bit-parity with torch.nn.GELU(); keep exact erf by default.

# ---- compile-time embedding constants (scale folded in, cos -> sin phase trick) ----
_FREQS_HALF = np.exp(-(math.log(10000.0) / (HALF - 1)) * np.arange(HALF)).astype(np.float32)
_FREQ16 = np.concatenate([_FREQS_HALF, _FREQS_HALF])                       # (16,)
_PHASE16 = np.concatenate([np.zeros(HALF), np.full(HALF, np.pi / 2.0)]).astype(np.float32)
_SCALED_FREQ = np.concatenate([_FREQ16 * INPUT_SCALE,
                               _FREQ16 * INPUT_SCALE,
                               _FREQ16 * TIME_SCALE]).astype(np.float32)   # (48,)
_PHASE = np.tile(_PHASE16, 3).astype(np.float32)                           # (48,)

# ---- packed-slab column offsets ----
_W0_OFF = 0
_WBLK_OFF = CONCAT_SIZE
_WOUT_OFF = CONCAT_SIZE + HIDDEN_LAYERS * HIDDEN_SIZE
W_SLAB_COLS = _WOUT_OFF + HIDDEN_SIZE          # 176
_B0_COL = 0
_BBLK_COL = 1
_BOUT_COL = 1 + HIDDEN_LAYERS                  # 4
_SFREQ_COL = _BOUT_COL + 1                     # 5
_PHASE_COL = _SFREQ_COL + 1                    # 6
B_SLAB_COLS = 8


def _gelu(x):
    if APPROX_GELU:
        c = math.sqrt(2.0 / math.pi)
        return 0.5 * x * (1.0 + jnp.tanh(c * (x + 0.044715 * x * x * x)))
    # PyTorch nn.GELU() default: exact erf-based GELU.
    return 0.5 * x * (1.0 + lax.erf(x * (1.0 / math.sqrt(2.0))))


# --------------------------------- kernel -------------------------------------
def mlpsps_kernel(idx_ref, xt_ref, w_ref, b_ref, o_ref):
    # idx_ref (SMEM scalar) is consumed by the slab index_maps (scalar prefetch).
    del idx_ref
    tb = xt_ref.shape[1]

    # ---- fused sinusoidal embedding, transposed layout: emb is (48, TB) ------
    # emb[j, b] = sin(src(j)[b] * scaled_freq[j] + phase[j])
    #   src(j) = x1 (j<16), x2 (16<=j<32), t (else);  phase = 0 or pi/2 (cos = sin+pi/2)
    row = lax.broadcasted_iota(jnp.int32, (CONCAT_SIZE, tb), 0)
    x1 = xt_ref[0:1, :]
    x2 = xt_ref[1:2, :]
    tt = xt_ref[2:3, :]
    vals = jnp.where(row < EMB_SIZE, x1, jnp.where(row < 2 * EMB_SIZE, x2, tt))
    sfreq = b_ref[:, _SFREQ_COL:_SFREQ_COL + 1]    # (48, 1)
    phase = b_ref[:, _PHASE_COL:_PHASE_COL + 1]    # (48, 1)
    emb = jnp.sin(vals * sfreq + phase)            # (48, TB), lane-dense over batch

    # ---- joint_mlp in (feature, batch) layout: lanes = batch -----------------
    w0t = w_ref[:, _W0_OFF:_W0_OFF + CONCAT_SIZE]                  # (32, 48)
    b0 = b_ref[0:HIDDEN_SIZE, _B0_COL:_B0_COL + 1]                 # (32, 1)
    h = _gelu(jnp.dot(w0t, emb, preferred_element_type=jnp.float32) + b0)

    for i in range(HIDDEN_LAYERS):
        c0 = _WBLK_OFF + i * HIDDEN_SIZE
        wt = w_ref[:, c0:c0 + HIDDEN_SIZE]                         # (32, 32)
        bb = b_ref[0:HIDDEN_SIZE, _BBLK_COL + i:_BBLK_COL + i + 1]  # (32, 1)
        h = h + _gelu(jnp.dot(wt, h, preferred_element_type=jnp.float32) + bb)

    # output head: Wout^T is stored padded to 32 rows (rows >= 2 are zero);
    # do the full 32-row dot (same MXU tile) and slice the 2 real rows.
    woutt = w_ref[:, _WOUT_OFF:_WOUT_OFF + HIDDEN_SIZE]            # (32, 32)
    bout = b_ref[0:OUT_SIZE, _BOUT_COL:_BOUT_COL + 1]              # (2, 1)
    out_full = jnp.dot(woutt, h, preferred_element_type=jnp.float32)   # (32, TB)
    o_ref[...] = out_full[0:OUT_SIZE, :] + bout                    # (2, TB) lane-dense


# --------------------------------- wrapper ------------------------------------
def _pick_tile_b(B: int, max_tile_b: int = 4096) -> int:
    """Batch tile: single block for small/odd B; otherwise lane-aligned tiles with
    >= 2 tiles so the parallel grid axis can shard across v7x's two TensorCores."""
    if B < 512 or B % 256 != 0:
        return B                      # block_shape == full array dims is always legal
    tb = min(max_tile_b, B // 2)
    tb -= tb % 128
    while B % tb:
        tb -= 128
    return tb


def _mlpsps_forward_impl(x, t, wslab, bslab, *, max_tile_b=4096):
    B = x.shape[0]
    TB = _pick_tile_b(B, max_tile_b)
    assert B % TB == 0
    n_tiles = B // TB

    # timestep -> sub-MLP index (trunc toward zero, mirroring Python int()), clamped
    # so out-of-range t can never produce an OOB weight DMA.
    t_idx = jnp.clip((t[0] / TIME_SCALE).astype(jnp.int32), 0, NUM_TIMESTEPS - 1).reshape(1)

    # single input slab: rows = [x1, x2, t]; batch on the lane axis.
    xt = jnp.stack([x[:, 0], x[:, 1], t.astype(jnp.float32)], axis=0)   # (3, B)

    grid_spec = pltpu.PrefetchScalarGridSpec(
        num_scalar_prefetch=1,            # t_idx lands in SMEM, feeds every index_map
        grid=(n_tiles,),
        in_specs=[
            pl.BlockSpec((3, TB), lambda i, idx: (0, i)),                       # xt
            pl.BlockSpec((None, HIDDEN_SIZE, W_SLAB_COLS),
                         lambda i, idx: (idx[0], 0, 0)),                        # weight slab
            pl.BlockSpec((None, CONCAT_SIZE, B_SLAB_COLS),
                         lambda i, idx: (idx[0], 0, 0)),                        # bias+const slab
        ],
        out_specs=pl.BlockSpec((OUT_SIZE, TB), lambda i, idx: (0, i)),
    )

    out_t = pl.pallas_call(
        mlpsps_kernel,
        out_shape=jax.ShapeDtypeStruct((OUT_SIZE, B), jnp.float32),
        grid_spec=grid_spec,
        compiler_params=pltpu.CompilerParams(
            dimension_semantics=("parallel",)),   # batch axis: shards across TCs on v7x
    )(t_idx, xt, wslab, bslab)
    return out_t.T                                 # (B, 2)


@jax.jit
def mlpsps_forward(x, t, wslab, bslab):
    """MLPSPS.forward: all t are expected equal; sub-MLP selected on device."""
    # TODO(synk): the PyTorch-side `assert (t == t[0]).all()` is a host-side check and
    # is not replicated inside the jitted path (would require a device->host sync).
    return _mlpsps_forward_impl(x, t, wslab, bslab)


# ----------------------------- parameter init / packing -----------------------
def init_mlpsps_params(key):
    """Deterministically init NUM_TIMESTEPS independent MLPs (stacked on axis 0)."""
    def linear(k, fan_in, fan_out):
        kw, kb = jax.random.split(k)
        bound = 1.0 / math.sqrt(fan_in)
        w = jax.random.uniform(kw, (fan_in, fan_out), jnp.float32, -bound, bound)
        b = jax.random.uniform(kb, (fan_out,), jnp.float32, -bound, bound)
        return w, b

    W0, B0, WBLK, BBLK, WOUT, BOUT = [], [], [], [], [], []
    for tkey in jax.random.split(key, NUM_TIMESTEPS):
        k0, kblk, kout = jax.random.split(tkey, 3)
        w0, b0 = linear(k0, CONCAT_SIZE, HIDDEN_SIZE)
        wbs, bbs = [], []
        for kk in jax.random.split(kblk, HIDDEN_LAYERS):
            wb, bb = linear(kk, HIDDEN_SIZE, HIDDEN_SIZE)
            wbs.append(wb)
            bbs.append(bb)
        wout, bout = linear(kout, HIDDEN_SIZE, OUT_SIZE)
        W0.append(w0); B0.append(b0)
        WBLK.append(jnp.stack(wbs)); BBLK.append(jnp.stack(bbs))
        WOUT.append(wout); BOUT.append(bout)

    return (jnp.stack(W0), jnp.stack(B0), jnp.stack(WBLK),
            jnp.stack(BBLK), jnp.stack(WOUT), jnp.stack(BOUT))


def pack_mlpsps_params(stacked):
    """Pack the per-timestep parameters into the two transposed slabs the kernel uses."""
    w0, b0, wblk, bblk, wout, bout = stacked
    T = w0.shape[0]

    # weight slab (T, 32, 176) = [W0^T | Wblk0^T | Wblk1^T | Wblk2^T | Wout^T padded]
    w0t = jnp.swapaxes(w0, 1, 2)                                        # (T, 32, 48)
    wbt = [jnp.swapaxes(wblk[:, i], 1, 2) for i in range(HIDDEN_LAYERS)]
    woutt = jnp.swapaxes(wout, 1, 2)                                    # (T, 2, 32)
    woutt = jnp.pad(woutt, ((0, 0), (0, HIDDEN_SIZE - OUT_SIZE), (0, 0)))
    wslab = jnp.concatenate([w0t] + wbt + [woutt], axis=-1)             # (T, 32, 176)

    # bias + embedding-constant slab (T, 48, 8)
    def col(v, rows):
        v = jnp.pad(v, ((0, 0), (0, CONCAT_SIZE - rows)))
        return v[:, :, None]
    cols = ([col(b0, HIDDEN_SIZE)]
            + [col(bblk[:, i], HIDDEN_SIZE) for i in range(HIDDEN_LAYERS)]
            + [col(bout, OUT_SIZE)])
    sf = jnp.broadcast_to(jnp.asarray(_SCALED_FREQ)[None, :, None], (T, CONCAT_SIZE, 1))
    ph = jnp.broadcast_to(jnp.asarray(_PHASE)[None, :, None], (T, CONCAT_SIZE, 1))
    zero = jnp.zeros((T, CONCAT_SIZE, 1), jnp.float32)
    bslab = jnp.concatenate(cols + [sf, ph, zero], axis=-1)             # (T, 48, 8)
    return wslab, bslab


# ------------------------------ pure-JAX reference ----------------------------
def mlp_forward_ref(x, t, params):
    w0, b0, wblk, bblk, wout, bout = params
    freqs = jnp.asarray(_FREQS_HALF)

    def sinusoidal(v, scale):  # v: (B,)
        a = (v * scale)[:, None] * freqs[None, :]
        return jnp.concatenate([jnp.sin(a), jnp.cos(a)], axis=-1)

    emb = jnp.concatenate(
        [sinusoidal(x[:, 0], INPUT_SCALE),
         sinusoidal(x[:, 1], INPUT_SCALE),
         sinusoidal(t, TIME_SCALE)], axis=-1)
    h = jax.nn.gelu(emb @ w0 + b0, approximate=False)
    for i in range(HIDDEN_LAYERS):
        h = h + jax.nn.gelu(h @ wblk[i] + bblk[i], approximate=False)
    return h @ wout + bout


# ---------------------------------- main ---------------------------------------
if __name__ == "__main__":
    key = jax.random.PRNGKey(0)
    kparams, kx = jax.random.split(key)

    stacked_params = init_mlpsps_params(kparams)
    wslab, bslab = jax.block_until_ready(pack_mlpsps_params(stacked_params))

    B = 8
    x = jax.random.normal(kx, (B, 2), dtype=jnp.float32)
    t = jnp.full((B,), 3.0, dtype=jnp.float32)   # all equal, selects sub-MLP #3

    # host-side sanity check mirroring the PyTorch assert (outside the jitted path)
    assert bool((t == t[0]).all()), "all values of t is expected to be equal"

    out = jax.block_until_ready(mlpsps_forward(x, t, wslab, bslab))

    # verify against a pure-JAX reference of the selected sub-MLP
    # (tolerance slightly looser than 1e-5 because cos(a) is computed as sin(a + pi/2))
    sel = int(t[0] / TIME_SCALE)
    params_sel = tuple(p[sel] for p in stacked_params)
    ref = mlp_forward_ref(x, t, params_sel)
    assert out.shape == (B, OUT_SIZE)
    assert jnp.allclose(out, ref, atol=1e-4, rtol=1e-4), (out, ref)

    print("KERNEL_OK")
</pallas_src>

<mosaic_0001>
module attributes {stable_mosaic.version = 11 : i64} {
  func.func @mlpsps_kernel(%arg0: i32, %arg1: memref<1xi32, #tpu.memory_space<smem>>, %arg2: memref<3x8xf32, #tpu.memory_space<vmem>>, %arg3: memref<1x32x176xf32, #tpu.memory_space<vmem>>, %arg4: memref<1x48x8xf32, #tpu.memory_space<vmem>>, %arg5: memref<2x8xf32, #tpu.memory_space<vmem>>) attributes {dimension_semantics = [#tpu.dimension_semantics<parallel>], iteration_bounds = array<i64: 1>, scalar_prefetch = 1 : i64, scratch_operands = 0 : i64, tpu.core_type = #tpu.core_type<tc>, window_params = [{transform_indices = @transform_0, window_bounds = array<i64: 3, 8>}, {transform_indices = @transform_1, window_bounds = array<i64: 1, 32, 176>}, {transform_indices = @transform_2, window_bounds = array<i64: 1, 48, 8>}, {transform_indices = @transform_3, window_bounds = array<i64: 2, 8>}]} {
    %0 = tpu.iota {dimensions = array<i32: 0>} : vector<48x8xi32>
    %c0 = arith.constant 0 : index
    %c0_0 = arith.constant 0 : index
    %1 = vector.load %arg2[%c0, %c0_0] : memref<3x8xf32, #tpu.memory_space<vmem>>, vector<1x8xf32>
    %c1 = arith.constant 1 : index
    %c0_1 = arith.constant 0 : index
    %2 = vector.load %arg2[%c1, %c0_1] : memref<3x8xf32, #tpu.memory_space<vmem>>, vector<1x8xf32>
    %c2 = arith.constant 2 : index
    %c0_2 = arith.constant 0 : index
    %3 = vector.load %arg2[%c2, %c0_2] : memref<3x8xf32, #tpu.memory_space<vmem>>, vector<1x8xf32>
    %c16_i32 = arith.constant 16 : i32
    %4 = vector.broadcast %c16_i32 : i32 to vector<48x8xi32>
    %5 = arith.cmpi slt, %0, %4 : vector<48x8xi32>
    %c32_i32 = arith.constant 32 : i32
    %6 = vector.broadcast %c32_i32 : i32 to vector<48x8xi32>
    %7 = arith.cmpi slt, %0, %6 : vector<48x8xi32>
    %8 = vector.shape_cast %2 : vector<1x8xf32> to vector<1x8xf32>
    %9 = vector.broadcast %8 : vector<1x8xf32> to vector<48x8xf32>
    %10 = vector.shape_cast %3 : vector<1x8xf32> to vector<1x8xf32>
    %11 = vector.broadcast %10 : vector<1x8xf32> to vector<48x8xf32>
    %12 = arith.select %7, %9, %11 : vector<48x8xi1>, vector<48x8xf32>
    %13 = vector.shape_cast %1 : vector<1x8xf32> to vector<1x8xf32>
    %14 = vector.broadcast %13 : vector<1x8xf32> to vector<48x8xf32>
    %15 = arith.select %5, %14, %12 : vector<48x8xi1>, vector<48x8xf32>
    %c0_3 = arith.constant 0 : index
    %c0_4 = arith.constant 0 : index
    %c5 = arith.constant 5 : index
    %16 = vector.load %arg4[%c0_3, %c0_4, %c5] : memref<1x48x8xf32, #tpu.memory_space<vmem>>, vector<1x48x1xf32>
    %17 = vector.shape_cast %16 : vector<1x48x1xf32> to vector<48x1xf32>
    %c0_5 = arith.constant 0 : index
    %c0_6 = arith.constant 0 : index
    %c6 = arith.constant 6 : index
    %18 = vector.load %arg4[%c0_5, %c0_6, %c6] : memref<1x48x8xf32, #tpu.memory_space<vmem>>, vector<1x48x1xf32>
    %19 = vector.shape_cast %18 : vector<1x48x1xf32> to vector<48x1xf32>
    %20 = vector.broadcast %17 : vector<48x1xf32> to vector<48x8xf32>
    %21 = arith.mulf %15, %20 : vector<48x8xf32>
    %22 = vector.broadcast %19 : vector<48x1xf32> to vector<48x8xf32>
    %23 = arith.addf %21, %22 : vector<48x8xf32>
    %24 = math.sin %23 : vector<48x8xf32>
    %c0_7 = arith.constant 0 : index
    %c0_8 = arith.constant 0 : index
    %c0_9 = arith.constant 0 : index
    %25 = vector.load %arg3[%c0_7, %c0_8, %c0_9] : memref<1x32x176xf32, #tpu.memory_space<vmem>>, vector<1x32x48xf32>
    %26 = vector.shape_cast %25 : vector<1x32x48xf32> to vector<32x48xf32>
    %c0_10 = arith.constant 0 : index
    %c0_11 = arith.constant 0 : index
    %c0_12 = arith.constant 0 : index
    %27 = vector.load %arg4[%c0_10, %c0_11, %c0_12] : memref<1x48x8xf32, #tpu.memory_space<vmem>>, vector<1x32x1xf32>
    %28 = vector.shape_cast %27 : vector<1x32x1xf32> to vector<32x1xf32>
    %cst = arith.constant dense<0.000000e+00> : vector<32x8xf32>
    %29 = tpu.matmul %26, %24, %cst {dimension_numbers = #tpu.dot_dimension_numbers<[1], [0], [0], [1], [0, 0, 1, 1], [], []>} : vector<32x48xf32>, vector<48x8xf32>, vector<32x8xf32> -> vector<32x8xf32>
    %30 = vector.broadcast %28 : vector<32x1xf32> to vector<32x8xf32>
    %31 = arith.addf %29, %30 : vector<32x8xf32>
    %cst_13 = arith.constant 5.000000e-01 : f32
    %32 = vector.broadcast %cst_13 : f32 to vector<32x8xf32>
    %33 = arith.mulf %32, %31 : vector<32x8xf32>
    %cst_14 = arith.constant 0.707106769 : f32
    %34 = vector.broadcast %cst_14 : f32 to vector<32x8xf32>
    %35 = arith.mulf %31, %34 : vector<32x8xf32>
    %36 = math.erf %35 : vector<32x8xf32>
    %cst_15 = arith.constant 1.000000e+00 : f32
    %37 = vector.broadcast %cst_15 : f32 to vector<32x8xf32>
    %38 = arith.addf %37, %36 : vector<32x8xf32>
    %39 = arith.mulf %33, %38 : vector<32x8xf32>
    %c0_16 = arith.constant 0 : index
    %c0_17 = arith.constant 0 : index
    %c48 = arith.constant 48 : index
    %40 = vector.load %arg3[%c0_16, %c0_17, %c48] : memref<1x32x176xf32, #tpu.memory_space<vmem>>, vector<1x32x32xf32>
    %41 = vector.shape_cast %40 : vector<1x32x32xf32> to vector<32x32xf32>
    %c0_18 = arith.constant 0 : index
    %c0_19 = arith.constant 0 : index
    %c1_20 = arith.constant 1 : index
    %42 = vector.load %arg4[%c0_18, %c0_19, %c1_20] : memref<1x48x8xf32, #tpu.memory_space<vmem>>, vector<1x32x1xf32>
    %43 = vector.shape_cast %42 : vector<1x32x1xf32> to vector<32x1xf32>
    %cst_21 = arith.constant dense<0.000000e+00> : vector<32x8xf32>
    %44 = tpu.matmul %41, %39, %cst_21 {dimension_numbers = #tpu.dot_dimension_numbers<[1], [0], [0], [1], [0, 0, 1, 1], [], []>} : vector<32x32xf32>, vector<32x8xf32>, vector<32x8xf32> -> vector<32x8xf32>
    %45 = vector.broadcast %43 : vector<32x1xf32> to vector<32x8xf32>
    %46 = arith.addf %44, %45 : vector<32x8xf32>
    %cst_22 = arith.constant 5.000000e-01 : f32
    %47 = vector.broadcast %cst_22 : f32 to vector<32x8xf32>
    %48 = arith.mulf %47, %46 : vector<32x8xf32>
    %cst_23 = arith.constant 0.707106769 : f32
    %49 = vector.broadcast %cst_23 : f32 to vector<32x8xf32>
    %50 = arith.mulf %46, %49 : vector<32x8xf32>
    %51 = math.erf %50 : vector<32x8xf32>
    %cst_24 = arith.constant 1.000000e+00 : f32
    %52 = vector.broadcast %cst_24 : f32 to vector<32x8xf32>
    %53 = arith.addf %52, %51 : vector<32x8xf32>
    %54 = arith.mulf %48, %53 : vector<32x8xf32>
    %55 = arith.addf %39, %54 : vector<32x8xf32>
    %c0_25 = arith.constant 0 : index
    %c0_26 = arith.constant 0 : index
    %c80 = arith.constant 80 : index
    %56 = vector.load %arg3[%c0_25, %c0_26, %c80] : memref<1x32x176xf32, #tpu.memory_space<vmem>>, vector<1x32x32xf32>
    %57 = vector.shape_cast %56 : vector<1x32x32xf32> to vector<32x32xf32>
    %c0_27 = arith.constant 0 : index
    %c0_28 = arith.constant 0 : index
    %c2_29 = arith.constant 2 : index
    %58 = vector.load %arg4[%c0_27, %c0_28, %c2_29] : memref<1x48x8xf32, #tpu.memory_space<vmem>>, vector<1x32x1xf32>
    %59 = vector.shape_cast %58 : vector<1x32x1xf32> to vector<32x1xf32>
    %cst_30 = arith.constant dense<0.000000e+00> : vector<32x8xf32>
    %60 = tpu.matmul %57, %55, %cst_30 {dimension_numbers = #tpu.dot_dimension_numbers<[1], [0], [0], [1], [0, 0, 1, 1], [], []>} : vector<32x32xf32>, vector<32x8xf32>, vector<32x8xf32> -> vector<32x8xf32>
    %61 = vector.broadcast %59 : vector<32x1xf32> to vector<32x8xf32>
    %62 = arith.addf %60, %61 : vector<32x8xf32>
    %cst_31 = arith.constant 5.000000e-01 : f32
    %63 = vector.broadcast %cst_31 : f32 to vector<32x8xf32>
    %64 = arith.mulf %63, %62 : vector<32x8xf32>
    %cst_32 = arith.constant 0.707106769 : f32
    %65 = vector.broadcast %cst_32 : f32 to vector<32x8xf32>
    %66 = arith.mulf %62, %65 : vector<32x8xf32>
    %67 = math.erf %66 : vector<32x8xf32>
    %cst_33 = arith.constant 1.000000e+00 : f32
    %68 = vector.broadcast %cst_33 : f32 to vector<32x8xf32>
    %69 = arith.addf %68, %67 : vector<32x8xf32>
    %70 = arith.mulf %64, %69 : vector<32x8xf32>
    %71 = arith.addf %55, %70 : vector<32x8xf32>
    %c0_34 = arith.constant 0 : index
    %c0_35 = arith.constant 0 : index
    %c112 = arith.constant 112 : index
    %72 = vector.load %arg3[%c0_34, %c0_35, %c112] : memref<1x32x176xf32, #tpu.memory_space<vmem>>, vector<1x32x32xf32>
    %73 = vector.shape_cast %72 : vector<1x32x32xf32> to vector<32x32xf32>
    %c0_36 = arith.constant 0 : index
    %c0_37 = arith.constant 0 : index
    %c3 = arith.constant 3 : index
    %74 = vector.load %arg4[%c0_36, %c0_37, %c3] : memref<1x48x8xf32, #tpu.memory_space<vmem>>, vector<1x32x1xf32>
    %75 = vector.shape_cast %74 : vector<1x32x1xf32> to vector<32x1xf32>
    %cst_38 = arith.constant dense<0.000000e+00> : vector<32x8xf32>
    %76 = tpu.matmul %73, %71, %cst_38 {dimension_numbers = #tpu.dot_dimension_numbers<[1], [0], [0], [1], [0, 0, 1, 1], [], []>} : vector<32x32xf32>, vector<32x8xf32>, vector<32x8xf32> -> vector<32x8xf32>
    %77 = vector.broadcast %75 : vector<32x1xf32> to vector<32x8xf32>
    %78 = arith.addf %76, %77 : vector<32x8xf32>
    %cst_39 = arith.constant 5.000000e-01 : f32
    %79 = vector.broadcast %cst_39 : f32 to vector<32x8xf32>
    %80 = arith.mulf %79, %78 : vector<32x8xf32>
    %cst_40 = arith.constant 0.707106769 : f32
    %81 = vector.broadcast %cst_40 : f32 to vector<32x8xf32>
    %82 = arith.mulf %78, %81 : vector<32x8xf32>
    %83 = math.erf %82 : vector<32x8xf32>
    %cst_41 = arith.constant 1.000000e+00 : f32
    %84 = vector.broadcast %cst_41 : f32 to vector<32x8xf32>
    %85 = arith.addf %84, %83 : vector<32x8xf32>
    %86 = arith.mulf %80, %85 : vector<32x8xf32>
    %87 = arith.addf %71, %86 : vector<32x8xf32>
    %c0_42 = arith.constant 0 : index
    %c0_43 = arith.constant 0 : index
    %c144 = arith.constant 144 : index
    %88 = vector.load %arg3[%c0_42, %c0_43, %c144] : memref<1x32x176xf32, #tpu.memory_space<vmem>>, vector<1x32x32xf32>
    %89 = vector.shape_cast %88 : vector<1x32x32xf32> to vector<32x32xf32>
    %c0_44 = arith.constant 0 : index
    %c0_45 = arith.constant 0 : index
    %c4 = arith.constant 4 : index
    %90 = vector.load %arg4[%c0_44, %c0_45, %c4] : memref<1x48x8xf32, #tpu.memory_space<vmem>>, vector<1x2x1xf32>
    %91 = vector.shape_cast %90 : vector<1x2x1xf32> to vector<2x1xf32>
    %cst_46 = arith.constant dense<0.000000e+00> : vector<32x8xf32>
    %92 = tpu.matmul %89, %87, %cst_46 {dimension_numbers = #tpu.dot_dimension_numbers<[1], [0], [0], [1], [0, 0, 1, 1], [], []>} : vector<32x32xf32>, vector<32x8xf32>, vector<32x8xf32> -> vector<32x8xf32>
    %93 = vector.extract_strided_slice %92 {offsets = [0, 0], sizes = [2, 8], strides = [1, 1]} : vector<32x8xf32> to vector<2x8xf32>
    %94 = vector.broadcast %91 : vector<2x1xf32> to vector<2x8xf32>
    %95 = arith.addf %93, %94 : vector<2x8xf32>
    %c0_47 = arith.constant 0 : index
    %c0_48 = arith.constant 0 : index
    %96 = vector.load %arg5[%c0_47, %c0_48] : memref<2x8xf32, #tpu.memory_space<vmem>>, vector<2x8xf32>
    tpu.vector_store %arg5[%c0_47, %c0_48], %95 {strides = array<i32>} : memref<2x8xf32, #tpu.memory_space<vmem>>, vector<2x8xf32>,
    return
  }
  func.func @transform_0(%arg0: i32, %arg1: memref<1xi32, #tpu.memory_space<smem>>) -> (i32, i32) {
    %c0_i32 = arith.constant 0 : i32
    %c0_i32_0 = arith.constant 0 : i32
    return %c0_i32, %arg0 : i32, i32
  }
  func.func @transform_1(%arg0: i32, %arg1: memref<1xi32, #tpu.memory_space<smem>>) -> (i32, i32, i32) {
    %c0 = arith.constant 0 : index
    %0 = memref.load %arg1[%c0] : memref<1xi32, #tpu.memory_space<smem>>
    %c0_i32 = arith.constant 0 : i32
    %c0_i32_0 = arith.constant 0 : i32
    %c0_i32_1 = arith.constant 0 : i32
    return %0, %c0_i32, %c0_i32_0 : i32, i32, i32
  }
  func.func @transform_2(%arg0: i32, %arg1: memref<1xi32, #tpu.memory_space<smem>>) -> (i32, i32, i32) {
    %c0 = arith.constant 0 : index
    %0 = memref.load %arg1[%c0] : memref<1xi32, #tpu.memory_space<smem>>
    %c0_i32 = arith.constant 0 : i32
    %c0_i32_0 = arith.constant 0 : i32
    %c0_i32_1 = arith.constant 0 : i32
    return %0, %c0_i32, %c0_i32_0 : i32, i32, i32
  }
  func.func @transform_3(%arg0: i32, %arg1: memref<1xi32, #tpu.memory_space<smem>>) -> (i32, i32) {
    %c0_i32 = arith.constant 0 : i32
    %c0_i32_0 = arith.constant 0 : i32
    return %c0_i32, %arg0 : i32, i32
  }
}

</mosaic_0001>

<llo_original>
// kernel: mlpsps_forward.1
$region0: #{mlpsps_forward.1}
  #allocation0 [shape = 'u32[]', space=smem, size = 0x4, offset = 0x4, fixed_abs, tag = 'smem constant byte address 0x4 - core index']
  #allocation1 [shape = 'u32[144,128]{1,0:T(1,128)}', space=vmem, size = 0x12000, scoped, tag = 'internal scratch']
  #allocation2 [shape = 's32[1]{0}', space=sflag, size = 0x4, scoped, tag = 'scoped memory for mlpsps_forward.1']
  #allocation3 [shape = 's32[1]{0:T(128)S(6)}', space=smem, size = 0x200, scoped, tag = 'prefetched SMEM operand 0']
  %s0 = inlined_call_operand.<no memory space> [shape: s32[1], index: 0, kind: input, shape index: {}]
  %s1 = inlined_call_operand.vmem [shape: f32[3,8], index: 1, kind: input, shape index: {}]
  %s2 = inlined_call_operand.vmem [shape: f32[5,32,176], index: 2, kind: input, shape index: {}]
  %s3 = inlined_call_operand.vmem [shape: f32[5,48,8], index: 3, kind: input, shape index: {}]
  %s4 = inlined_call_operand.hbm [shape: f32[2,8], index: 4, kind: output, shape index: {}]
  %s5 = sld [smem:[#allocation0]]
  $region22: #{mlpsps_forward.1} parent=0
    _
  %s7 = ssub.s32 1, %s5
  %s8 = scalar_select 0, %s7, %s5
  %9 = sst [smem:[#allocation3]] %s0
  $region1: #{mlpsps_forward.1} parent=0
    #allocation4 [shape = 'u8[1024]{0}', space=vmem, size = 0x400, scoped, tag = 'output window, operand 0, single buffered']
    #allocation5 [shape = 's32[1]{0}', space=sflag, size = 0x4, scoped, tag = 'scoped memory for mlpsps_forward.1']
    %10 = vsyncpa [#allocation5], 0
    // Predicated region
    $region2: #{mlpsps_forward.1} parent=1 // pred_check
      _
    $region3: #{mlpsps_forward.1} parent=1 // pred_check_branch
      %12 = sbr.rel (0) target = $region5
    $region4: #{mlpsps_forward.1} parent=1 // pred_region
      _
    $region5: #{mlpsps_forward.1} parent=1 // pred_fallthru
      _
    // Predicated region
    $region6: #{mlpsps_forward.1} parent=1 // pred_check
      _
    $region7: #{mlpsps_forward.1} parent=1 // pred_check_branch
      %14 = sbr.rel (0) target = $region9
    $region8: #{mlpsps_forward.1} parent=1 // pred_region
      %s15 = sld [smem:[#allocation3]]
      %p16 = scmp.lt.s32.totalorder %s15, 4
      %s17 = scalar_select %p16, %s15, 4
      %s18 = smul.addr %s17, 8
      %s19 = smul.addr %s18, 8
      %s20 = scalar_lea.vmem %s2, %s19
      %s21 = sld [smem:[#allocation3]]
    $region9: #{mlpsps_forward.1} parent=1 // pred_fallthru
      _
    // Predicated region
    $region10: #{mlpsps_forward.1} parent=1 // pred_check
      _
    $region11: #{mlpsps_forward.1} parent=1 // pred_check_branch
      %23 = sbr.rel (0) target = $region13
    $region12: #{mlpsps_forward.1} parent=1 // pred_region
      %s24 = sld [smem:[#allocation3]]
      %p25 = scmp.lt.s32.totalorder %s24, 4
      %s26 = scalar_select %p25, %s24, 4
      %s27 = smul.addr %s26, 6
      %s28 = smul.addr %s27, 8
      %s29 = scalar_lea.vmem %s3, %s28
      %s30 = sld [smem:[#allocation3]]
    $region13: #{mlpsps_forward.1} parent=1 // pred_fallthru
      _
    %s31 = sld [smem:[#allocation3]]
    %p32 = scmp.lt.s32.totalorder %s31, 4
    %s33 = scalar_select %p32, %s31, 4
    %s34 = smul.addr %s33, 8
    %s35 = smul.addr %s34, 8
    %s36 = scalar_lea.vmem %s2, %s35
    %s37 = sld [smem:[#allocation3]]
    %p38 = scmp.lt.s32.totalorder %s37, 4
    %s39 = scalar_select %p38, %s37, 4
    %s40 = smul.addr %s39, 6
    %s41 = smul.addr %s40, 8
    %s42 = scalar_lea.vmem %s3, %s41
    %s43 = sld [smem:[#allocation3]]
    %p44 = scmp.lt.s32.totalorder %s43, 4
    %s45 = scalar_select %p44, %s43, 4
    %s46 = smul.addr %s45, 8
    %s47 = smul.addr %s46, 8
    %s48 = scalar_lea.vmem %s2, %s47
    %s49 = sld [smem:[#allocation3]]
    %s50 = sld [smem:[#allocation3]]
    %p51 = scmp.lt.s32.totalorder %s50, 4
    %s52 = scalar_select %p51, %s50, 4
    %s53 = smul.addr %s52, 6
    %s54 = smul.addr %s53, 8
    %s55 = scalar_lea.vmem %s3, %s54
    %s56 = sld [smem:[#allocation3]]
    %v57 = vlaneseq
    %v58 = vshrl.u32 %v57, 7
    %v59 = vadd.s32 %v58, 8
    %v60 = vadd.s32 %v58, 16
    %v61 = vadd.s32 %v58, 24
    %v62 = vadd.s32 %v58, 32
    %v63 = vadd.s32 %v58, 40
    %v64 = vld [vmem:[%s1] sm:$0x1]
    %v65 = vld [vmem:[%s1 + $0x1] sm:$0x1]
    %v66 = vld [vmem:[%s1 + $0x2] sm:$0x1]
    %vm67 = vcmp.lt.s32.totalorder %v58, 16
    %vm68 = vcmp.lt.s32.totalorder %v59, 16
    %vm69 = vcmp.lt.s32.totalorder %v60, 16
    %vm70 = vcmp.lt.s32.totalorder %v61, 16
    %vm71 = vcmp.lt.s32.totalorder %v62, 16
    %vm72 = vcmp.lt.s32.totalorder %v63, 16
    %vm73 = vcmp.lt.s32.totalorder %v58, 32
    %vm74 = vcmp.lt.s32.totalorder %v59, 32
    %vm75 = vcmp.lt.s32.totalorder %v60, 32
    %vm76 = vcmp.lt.s32.totalorder %v61, 32
    %vm77 = vcmp.lt.s32.totalorder %v62, 32
    %vm78 = vcmp.lt.s32.totalorder %v63, 32
    %v79 = vlaneseq
    %v80 = vshrl.u32 %v79, 7
    %v81 = vsub.s32 0, %v80
    %v82 = vrot.slane %v65, %v81
    %v83 = vlaneseq
    %v84 = vshrl.u32 %v83, 7
    %v85 = vsub.s32 0, %v84
    %v86 = vrot.slane %v66, %v85
    %v87 = vsel %vm73, %v82, %v86
    %v88 = vsel %vm74, %v82, %v86
    %v89 = vsel %vm75, %v82, %v86
    %v90 = vsel %vm76, %v82, %v86
    %v91 = vsel %vm77, %v82, %v86
    %v92 = vsel %vm78, %v82, %v86
    %v93 = vlaneseq
    %v94 = vshrl.u32 %v93, 7
    %v95 = vsub.s32 0, %v94
    %v96 = vrot.slane %v64, %v95
    %v97 = vsel %vm67, %v96, %v87
    %v98 = vsel %vm68, %v96, %v88
    %v99 = vsel %vm69, %v96, %v89
    %v100 = vsel %vm70, %v96, %v90
    %v101 = vsel %vm71, %v96, %v91
    %v102 = vsel %vm72, %v96, %v92
    %v103 = vld [vmem:[%s55] sm:$0xff]
    %v104 = vld [vmem:[%s55 + $0x8] sm:$0xff]
    %v105 = vld [vmem:[%s55 + $0x10] sm:$0xff]
    %v106 = vld [vmem:[%s55 + $0x18] sm:$0xff]
    %v107 = vld [vmem:[%s55 + $0x20] sm:$0xff]
    %v108 = vld [vmem:[%s55 + $0x28] sm:$0xff]
    %110 = vset.pattern.permute.xlu0 5
    %111 = vperm.xlu0 %110, %v103
    %v112 = vpop.permute.xlu0 %111
    %115 = vset.pattern.permute.xlu0 5
    %116 = vperm.xlu0 %115, %v104
    %v117 = vpop.permute.xlu0 %116
    %120 = vset.pattern.permute.xlu0 5
    %121 = vperm.xlu0 %120, %v105
    %v122 = vpop.permute.xlu0 %121
    %125 = vset.pattern.permute.xlu0 5
    %126 = vperm.xlu0 %125, %v106
    %v127 = vpop.permute.xlu0 %126
    %130 = vset.pattern.permute.xlu0 5
    %131 = vperm.xlu0 %130, %v107
    %v132 = vpop.permute.xlu0 %131
    %135 = vset.pattern.permute.xlu0 5
    %136 = vperm.xlu0 %135, %v108
    %v137 = vpop.permute.xlu0 %136
    %v139 = vmul.f32 %v97, %v112
    %v140 = vmul.f32 %v98, %v117
    %v141 = vmul.f32 %v99, %v122
    %v142 = vmul.f32 %v100, %v127
    %v143 = vmul.f32 %v101, %v132
    %v144 = vmul.f32 %v102, %v137
    %145 = vset.pattern.permute.xlu0 6
    %146 = vperm.xlu0 %145, %v103
    %v147 = vpop.permute.xlu0 %146
    %149 = vset.pattern.permute.xlu0 6
    %150 = vperm.xlu0 %149, %v104
    %v151 = vpop.permute.xlu0 %150
    %153 = vset.pattern.permute.xlu0 6
    %154 = vperm.xlu0 %153, %v105
    %v155 = vpop.permute.xlu0 %154
    %157 = vset.pattern.permute.xlu0 6
    %158 = vperm.xlu0 %157, %v106
    %v159 = vpop.permute.xlu0 %158
    %161 = vset.pattern.permute.xlu0 6
    %162 = vperm.xlu0 %161, %v107
    %v163 = vpop.permute.xlu0 %162
    %165 = vset.pattern.permute.xlu0 6
    %166 = vperm.xlu0 %165, %v108
    %v167 = vpop.permute.xlu0 %166
    %v169 = vadd.f32 %v139, %v147
    %v170 = vadd.f32 %v140, %v151
    %v171 = vadd.f32 %v141, %v155
    %v172 = vadd.f32 %v142, %v159
    %v173 = vadd.f32 %v143, %v163
    %v174 = vadd.f32 %v144, %v167
    %v175 = vand.u32 2147483647, %v169
    %vm176 = vcmp.le.f32.partialorder %v175, 0.7853982
    %vm177 = vcmp.lt.s32.totalorder %v169, 0
    %v178 = vand.u32 %v169, 2139095040
    %v179 = vshrl.u32 %v178, 23
    %v180 = vsub.s32 %v179, 127
    %v181 = vand.u32 2147483647, %v169
    %v182 = vand.u32 %v181, 8388607
    %v183 = vor.u32 %v182, 8388608
    %v184 = vsub.s32 0, %v183
    %v185 = vadd.s32 %v180, 1
    %vm186 = vcmp.gt.s32.totalorder %v185, 0
    %v187 = vsel %vm186, %v185, 0
    %v188 = vshrl.u32 %v187, 5
    %v189 = vand.u32 %v187, 31
    %v190 = vsub.s32 32, %v189
    %v191 = vshrl.u32 683565275, %v190
    %v192 = vshll.u32 683565275, %v189
    %v193 = vshrl.u32 2475754826, %v190
    %v194 = vor.u32 %v192, %v193
    %v195 = vshll.u32 2475754826, %v189
    %v196 = vshrl.u32 2131351028, %v190
    %v197 = vor.u32 %v195, %v196
    %v198 = vshll.u32 2131351028, %v189
    %v199 = vshrl.u32 2102212464, %v190
    %v200 = vor.u32 %v198, %v199
    %v201 = vshll.u32 2102212464, %v189
    %v202 = vshrl.u32 920167782, %v190
    %v203 = vor.u32 %v201, %v202
    %v204 = vshll.u32 920167782, %v189
    %v205 = vshrl.u32 1326507024, %v190
    %v206 = vor.u32 %v204, %v205
    %vm207 = vcmp.lt.s32.totalorder %v188, 1
    %vm208 = vcmp.lt.s32.totalorder %v188, 2
    %vm209 = vcmp.lt.s32.totalorder %v188, 3
    %vm210 = vcmp.lt.s32.totalorder %v188, 4
    %v211 = vsel %vm207, %v191, %v194
    %v212 = vsel %vm210, %v200, 2102212464
    %v213 = vsel %vm209, %v197, %v212
    %v214 = vsel %vm208, %v211, %v213
    %v215 = vsel %vm207, %v194, %v197
    %v216 = vsel %vm210, %v203, 920167782
    %v217 = vsel %vm209, %v200, %v216
    %v218 = vsel %vm208, %v215, %v217
    %v219 = vsel %vm207, %v197, %v200
    %v220 = vsel %vm210, %v206, 1326507024
    %v221 = vsel %vm209, %v203, %v220
    %v222 = vsel %vm208, %v219, %v221
    %v223 = vshll.u32 %v183, 8
    %v224 = vmul.u32.u64.compose %v223, %v222
    %v225 = vextract.low.u32 %v224
    %v226 = vextract.high.u32 %v224
    %v227 = vmul.u32.u64.compose %v223, %v218
    %v228 = vextract.low.u32 %v227
    %v229 = vextract.high.u32 %v227
    %v230 = vmul.u32 %v223, %v214
    %v231 = vadd.s32 %v226, %v228
    %vm232 = vc.u32 %v226, %v228
    %v233 = vadd.s32 %v229, 1
    %v234 = vsel %vm232, %v233, %v229
    %v235 = vadd.s32 %v230, %v234
    %v236 = vadd.s32 %v235, 536870912
    %v237 = vshrl.u32 %v236, 30
    %v238 = vshll.u32 %v237, 30
    %v239 = vsub.s32 %v235, %v238
    %vm240 = vcmp.lt.s32.totalorder %v239, 0
    %v241 = vsub.s32 0, %v239
    %v242 = vsel %vm240, %v241, %v239
    %v243 = vclz %v242
    %v244 = vsub.s32 %v243, 2
    %vm245 = vcmp.gt.s32.totalorder 0, %v244
    %v246 = vsel %vm245, 0, %v244
    %v247 = vsub.s32 32, %v246
    %v248 = vshll.u32 %v239, %v246
    %v249 = vshrl.u32 %v231, %v247
    %v250 = vor.u32 %v248, %v249
    %v251 = vsub.s32 4294967266, %v246
    %v252 = vadd.s32 %v251, 127
    %v253 = vshll.u32 %v252, 23
    %v254 = vor.u32 4788187, %v253
    %v255 = vand.u32 2147483647, %v254
    %v257 = vcvt.s32.f32 %v250
    %v258 = vmul.f32 %v257, %v255
    %v259 = vxor.u32 %v258, 2147483648
    %v260 = vsel %vm177, %v259, %v258
    %v261 = vsub.s32 4, %v237
    %v262 = vsel %vm177, %v261, %v237
    %v263 = vsel %vm176, %v169, %v260
    %v264 = vsel %vm176, 0, %v262
    %v265 = vcosq.f32.pop %v263
    %v266 = vsinq.f32.pop %v263
    %vm267 = vweird.f32 %v169
    %v268 = vadd.s32 %v264, 3
    %v269 = vand.u32 %v268, 3
    %vm270 = vcmp.lt.s32.totalorder %v269, 2
    %vm271 = vcmp.eq.s32.totalorder %v269, 0
    %v272 = vxor.u32 %v266, 2147483648
    %v273 = vsel %vm271, %v265, %v272
    %vm274 = vcmp.eq.s32.totalorder %v269, 2
    %v275 = vxor.u32 %v265, 2147483648
    %v276 = vsel %vm274, %v275, %v266
    %v277 = vsel %vm270, %v273, %v276
    %v278 = vsel %vm267, nan, %v277
    %v279 = vand.u32 2147483647, %v170
    %vm280 = vcmp.le.f32.partialorder %v279, 0.7853982
    %vm281 = vcmp.lt.s32.totalorder %v170, 0
    %v282 = vand.u32 %v170, 2139095040
    %v283 = vshrl.u32 %v282, 23
    %v284 = vsub.s32 %v283, 127
    %v285 = vand.u32 2147483647, %v170
    %v286 = vand.u32 %v285, 8388607
    %v287 = vor.u32 %v286, 8388608
    %v288 = vsub.s32 0, %v287
    %v289 = vadd.s32 %v284, 1
    %vm290 = vcmp.gt.s32.totalorder %v289, 0
    %v291 = vsel %vm290, %v289, 0
    %v292 = vshrl.u32 %v291, 5
    %v293 = vand.u32 %v291, 31
    %v294 = vsub.s32 32, %v293
    %v295 = vshrl.u32 683565275, %v294
    %v296 = vshll.u32 683565275, %v293
    %v297 = vshrl.u32 2475754826, %v294
    %v298 = vor.u32 %v296, %v297
    %v299 = vshll.u32 2475754826, %v293
    %v300 = vshrl.u32 2131351028, %v294
    %v301 = vor.u32 %v299, %v300
    %v302 = vshll.u32 2131351028, %v293
    %v303 = vshrl.u32 2102212464, %v294
    %v304 = vor.u32 %v302, %v303
    %v305 = vshll.u32 2102212464, %v293
    %v306 = vshrl.u32 920167782, %v294
    %v307 = vor.u32 %v305, %v306
    %v308 = vshll.u32 920167782, %v293
    %v309 = vshrl.u32 1326507024, %v294
    %v310 = vor.u32 %v308, %v309
    %vm311 = vcmp.lt.s32.totalorder %v292, 1
    %vm312 = vcmp.lt.s32.totalorder %v292, 2
    %vm313 = vcmp.lt.s32.totalorder %v292, 3
    %vm314 = vcmp.lt.s32.totalorder %v292, 4
    %v315 = vsel %vm311, %v295, %v298
    %v316 = vsel %vm314, %v304, 2102212464
    %v317 = vsel %vm313, %v301, %v316
    %v318 = vsel %vm312, %v315, %v317
    %v319 = vsel %vm311, %v298, %v301
    %v320 = vsel %vm314, %v307, 920167782
    %v321 = vsel %vm313, %v304, %v320
    %v322 = vsel %vm312, %v319, %v321
    %v323 = vsel %vm311, %v301, %v304
    %v324 = vsel %vm314, %v310, 1326507024
    %v325 = vsel %vm313, %v307, %v324
    %v326 = vsel %vm312, %v323, %v325
    %v327 = vshll.u32 %v287, 8
    %v328 = vmul.u32.u64.compose %v327, %v326
    %v329 = vextract.low.u32 %v328
    %v330 = vextract.high.u32 %v328
    %v331 = vmul.u32.u64.compose %v327, %v322
    %v332 = vextract.low.u32 %v331
    %v333 = vextract.high.u32 %v331
    %v334 = vmul.u32 %v327, %v318
    %v335 = vadd.s32 %v330, %v332
    %vm336 = vc.u32 %v330, %v332
    %v337 = vadd.s32 %v333, 1
    %v338 = vsel %vm336, %v337, %v333
    %v339 = vadd.s32 %v334, %v338
    %v340 = vadd.s32 %v339, 536870912
    %v341 = vshrl.u32 %v340, 30
    %v342 = vshll.u32 %v341, 30
    %v343 = vsub.s32 %v339, %v342
    %vm344 = vcmp.lt.s32.totalorder %v343, 0
    %v345 = vsub.s32 0, %v343
    %v346 = vsel %vm344, %v345, %v343
    %v347 = vclz %v346
    %v348 = vsub.s32 %v347, 2
    %vm349 = vcmp.gt.s32.totalorder 0, %v348
    %v350 = vsel %vm349, 0, %v348
    %v351 = vsub.s32 32, %v350
    %v352 = vshll.u32 %v343, %v350
    %v353 = vshrl.u32 %v335, %v351
    %v354 = vor.u32 %v352, %v353
    %v355 = vsub.s32 4294967266, %v350
    %v356 = vadd.s32 %v355, 127
    %v357 = vshll.u32 %v356, 23
    %v358 = vor.u32 4788187, %v357
    %v359 = vand.u32 2147483647, %v358
    %v361 = vcvt.s32.f32 %v354
    %v362 = vmul.f32 %v361, %v359
    %v363 = vxor.u32 %v362, 2147483648
    %v364 = vsel %vm281, %v363, %v362
    %v365 = vsub.s32 4, %v341
    %v366 = vsel %vm281, %v365, %v341
    %v367 = vsel %vm280, %v170, %v364
    %v368 = vsel %vm280, 0, %v366
    %v369 = vcosq.f32.pop %v367
    %v370 = vsinq.f32.pop %v367
    %vm371 = vweird.f32 %v170
    %v372 = vadd.s32 %v368, 3
    %v373 = vand.u32 %v372, 3
    %vm374 = vcmp.lt.s32.totalorder %v373, 2
    %vm375 = vcmp.eq.s32.totalorder %v373, 0
    %v376 = vxor.u32 %v370, 2147483648
    %v377 = vsel %vm375, %v369, %v376
    %vm378 = vcmp.eq.s32.totalorder %v373, 2
    %v379 = vxor.u32 %v369, 2147483648
    %v380 = vsel %vm378, %v379, %v370
    %v381 = vsel %vm374, %v377, %v380
    %v382 = vsel %vm371, nan, %v381
    %v383 = vand.u32 2147483647, %v171
    %vm384 = vcmp.le.f32.partialorder %v383, 0.7853982
    %vm385 = vcmp.lt.s32.totalorder %v171, 0
    %v386 = vand.u32 %v171, 2139095040
    %v387 = vshrl.u32 %v386, 23
    %v388 = vsub.s32 %v387, 127
    %v389 = vand.u32 2147483647, %v171
    %v390 = vand.u32 %v389, 8388607
    %v391 = vor.u32 %v390, 8388608
    %v392 = vsub.s32 0, %v391
    %v393 = vadd.s32 %v388, 1
    %vm394 = vcmp.gt.s32.totalorder %v393, 0
    %v395 = vsel %vm394, %v393, 0
    %v396 = vshrl.u32 %v395, 5
    %v397 = vand.u32 %v395, 31
    %v398 = vsub.s32 32, %v397
    %v399 = vshrl.u32 683565275, %v398
    %v400 = vshll.u32 683565275, %v397
    %v401 = vshrl.u32 2475754826, %v398
    %v402 = vor.u32 %v400, %v401
    %v403 = vshll.u32 2475754826, %v397
    %v404 = vshrl.u32 2131351028, %v398
    %v405 = vor.u32 %v403, %v404
    %v406 = vshll.u32 2131351028, %v397
    %v407 = vshrl.u32 2102212464, %v398
    %v408 = vor.u32 %v406, %v407
    %v409 = vshll.u32 2102212464, %v397
    %v410 = vshrl.u32 920167782, %v398
    %v411 = vor.u32 %v409, %v410
    %v412 = vshll.u32 920167782, %v397
    %v413 = vshrl.u32 1326507024, %v398
    %v414 = vor.u32 %v412, %v413
    %vm415 = vcmp.lt.s32.totalorder %v396, 1
    %vm416 = vcmp.lt.s32.totalorder %v396, 2
    %vm417 = vcmp.lt.s32.totalorder %v396, 3
    %vm418 = vcmp.lt.s32.totalorder %v396, 4
    %v419 = vsel %vm415, %v399, %v402
    %v420 = vsel %vm418, %v408, 2102212464
    %v421 = vsel %vm417, %v405, %v420
    %v422 = vsel %vm416, %v419, %v421
    %v423 = vsel %vm415, %v402, %v405
    %v424 = vsel %vm418, %v411, 920167782
    %v425 = vsel %vm417, %v408, %v424
    %v426 = vsel %vm416, %v423, %v425
    %v427 = vsel %vm415, %v405, %v408
    %v428 = vsel %vm418, %v414, 1326507024
    %v429 = vsel %vm417, %v411, %v428
    %v430 = vsel %vm416, %v427, %v429
    %v431 = vshll.u32 %v391, 8
    %v432 = vmul.u32.u64.compose %v431, %v430
    %v433 = vextract.low.u32 %v432
    %v434 = vextract.high.u32 %v432
    %v435 = vmul.u32.u64.compose %v431, %v426
    %v436 = vextract.low.u32 %v435
    %v437 = vextract.high.u32 %v435
    %v438 = vmul.u32 %v431, %v422
    %v439 = vadd.s32 %v434, %v436
    %vm440 = vc.u32 %v434, %v436
    %v441 = vadd.s32 %v437, 1
    %v442 = vsel %vm440, %v441, %v437
    %v443 = vadd.s32 %v438, %v442
    %v444 = vadd.s32 %v443, 536870912
    %v445 = vshrl.u32 %v444, 30
    %v446 = vshll.u32 %v445, 30
    %v447 = vsub.s32 %v443, %v446
    %vm448 = vcmp.lt.s32.totalorder %v447, 0
    %v449 = vsub.s32 0, %v447
    %v450 = vsel %vm448, %v449, %v447
    %v451 = vclz %v450
    %v452 = vsub.s32 %v451, 2
    %vm453 = vcmp.gt.s32.totalorder 0, %v452
    %v454 = vsel %vm453, 0, %v452
    %v455 = vsub.s32 32, %v454
    %v456 = vshll.u32 %v447, %v454
    %v457 = vshrl.u32 %v439, %v455
    %v458 = vor.u32 %v456, %v457
    %v459 = vsub.s32 4294967266, %v454
    %v460 = vadd.s32 %v459, 127
    %v461 = vshll.u32 %v460, 23
    %v462 = vor.u32 4788187, %v461
    %v463 = vand.u32 2147483647, %v462
    %v465 = vcvt.s32.f32 %v458
    %v466 = vmul.f32 %v465, %v463
    %v467 = vxor.u32 %v466, 2147483648
    %v468 = vsel %vm385, %v467, %v466
    %v469 = vsub.s32 4, %v445
    %v470 = vsel %vm385, %v469, %v445
    %v471 = vsel %vm384, %v171, %v468
    %v472 = vsel %vm384, 0, %v470
    %v473 = vcosq.f32.pop %v471
    %v474 = vsinq.f32.pop %v471
    %vm475 = vweird.f32 %v171
    %v476 = vadd.s32 %v472, 3
    %v477 = vand.u32 %v476, 3
    %vm478 = vcmp.lt.s32.totalorder %v477, 2
    %vm479 = vcmp.eq.s32.totalorder %v477, 0
    %v480 = vxor.u32 %v474, 2147483648
    %v481 = vsel %vm479, %v473, %v480
    %vm482 = vcmp.eq.s32.totalorder %v477, 2
    %v483 = vxor.u32 %v473, 2147483648
    %v484 = vsel %vm482, %v483, %v474
    %v485 = vsel %vm478, %v481, %v484
    %v486 = vsel %vm475, nan, %v485
    %v487 = vand.u32 2147483647, %v172
    %vm488 = vcmp.le.f32.partialorder %v487, 0.7853982
    %vm489 = vcmp.lt.s32.totalorder %v172, 0
    %v490 = vand.u32 %v172, 2139095040
    %v491 = vshrl.u32 %v490, 23
    %v492 = vsub.s32 %v491, 127
    %v493 = vand.u32 2147483647, %v172
    %v494 = vand.u32 %v493, 8388607
    %v495 = vor.u32 %v494, 8388608
    %v496 = vsub.s32 0, %v495
    %v497 = vadd.s32 %v492, 1
    %vm498 = vcmp.gt.s32.totalorder %v497, 0
    %v499 = vsel %vm498, %v497, 0
    %v500 = vshrl.u32 %v499, 5
    %v501 = vand.u32 %v499, 31
    %v502 = vsub.s32 32, %v501
    %v503 = vshrl.u32 683565275, %v502
    %v504 = vshll.u32 683565275, %v501
    %v505 = vshrl.u32 2475754826, %v502
    %v506 = vor.u32 %v504, %v505
    %v507 = vshll.u32 2475754826, %v501
    %v508 = vshrl.u32 2131351028, %v502
    %v509 = vor.u32 %v507, %v508
    %v510 = vshll.u32 2131351028, %v501
    %v511 = vshrl.u32 2102212464, %v502
    %v512 = vor.u32 %v510, %v511
    %v513 = vshll.u32 2102212464, %v501
    %v514 = vshrl.u32 920167782, %v502
    %v515 = vor.u32 %v513, %v514
    %v516 = vshll.u32 920167782, %v501
    %v517 = vshrl.u32 1326507024, %v502
    %v518 = vor.u32 %v516, %v517
    %vm519 = vcmp.lt.s32.totalorder %v500, 1
    %vm520 = vcmp.lt.s32.totalorder %v500, 2
    %vm521 = vcmp.lt.s32.totalorder %v500, 3
    %vm522 = vcmp.lt.s32.totalorder %v500, 4
    %v523 = vsel %vm519, %v503, %v506
    %v524 = vsel %vm522, %v512, 2102212464
    %v525 = vsel %vm521, %v509, %v524
    %v526 = vsel %vm520, %v523, %v525
    %v527 = vsel %vm519, %v506, %v509
    %v528 = vsel %vm522, %v515, 920167782
    %v529 = vsel %vm521, %v512, %v528
    %v530 = vsel %vm520, %v527, %v529
    %v531 = vsel %vm519, %v509, %v512
    %v532 = vsel %vm522, %v518, 1326507024
    %v533 = vsel %vm521, %v515, %v532
    %v534 = vsel %vm520, %v531, %v533
    %v535 = vshll.u32 %v495, 8
    %v536 = vmul.u32.u64.compose %v535, %v534
    %v537 = vextract.low.u32 %v536
    %v538 = vextract.high.u32 %v536
    %v539 = vmul.u32.u64.compose %v535, %v530
    %v540 = vextract.low.u32 %v539
    %v541 = vextract.high.u32 %v539
    %v542 = vmul.u32 %v535, %v526
    %v543 = vadd.s32 %v538, %v540
    %vm544 = vc.u32 %v538, %v540
    %v545 = vadd.s32 %v541, 1
    %v546 = vsel %vm544, %v545, %v541
    %v547 = vadd.s32 %v542, %v546
    %v548 = vadd.s32 %v547, 536870912
    %v549 = vshrl.u32 %v548, 30
    %v550 = vshll.u32 %v549, 30
    %v551 = vsub.s32 %v547, %v550
    %vm552 = vcmp.lt.s32.totalorder %v551, 0
    %v553 = vsub.s32 0, %v551
    %v554 = vsel %vm552, %v553, %v551
    %v555 = vclz %v554
    %v556 = vsub.s32 %v555, 2
    %vm557 = vcmp.gt.s32.totalorder 0, %v556
    %v558 = vsel %vm557, 0, %v556
    %v559 = vsub.s32 32, %v558
    %v560 = vshll.u32 %v551, %v558
    %v561 = vshrl.u32 %v543, %v559
    %v562 = vor.u32 %v560, %v561
    %v563 = vsub.s32 4294967266, %v558
    %v564 = vadd.s32 %v563, 127
    %v565 = vshll.u32 %v564, 23
    %v566 = vor.u32 4788187, %v565
    %v567 = vand.u32 2147483647, %v566
    %v569 = vcvt.s32.f32 %v562
    %v570 = vmul.f32 %v569, %v567
    %v571 = vxor.u32 %v570, 2147483648
    %v572 = vsel %vm489, %v571, %v570
    %v573 = vsub.s32 4, %v549
    %v574 = vsel %vm489, %v573, %v549
    %v575 = vsel %vm488, %v172, %v572
    %v576 = vsel %vm488, 0, %v574
    %v577 = vcosq.f32.pop %v575
    %v578 = vsinq.f32.pop %v575
    %vm579 = vweird.f32 %v172
    %v580 = vadd.s32 %v576, 3
    %v581 = vand.u32 %v580, 3
    %vm582 = vcmp.lt.s32.totalorder %v581, 2
    %vm583 = vcmp.eq.s32.totalorder %v581, 0
    %v584 = vxor.u32 %v578, 2147483648
    %v585 = vsel %vm583, %v577, %v584
    %vm586 = vcmp.eq.s32.totalorder %v581, 2
    %v587 = vxor.u32 %v577, 2147483648
    %v588 = vsel %vm586, %v587, %v578
    %v589 = vsel %vm582, %v585, %v588
    %v590 = vsel %vm579, nan, %v589
    %v591 = vand.u32 2147483647, %v173
    %vm592 = vcmp.le.f32.partialorder %v591, 0.7853982
    %vm593 = vcmp.lt.s32.totalorder %v173, 0
    %v594 = vand.u32 %v173, 2139095040
    %v595 = vshrl.u32 %v594, 23
    %v596 = vsub.s32 %v595, 127
    %v597 = vand.u32 2147483647, %v173
    %v598 = vand.u32 %v597, 8388607
    %v599 = vor.u32 %v598, 8388608
    %v600 = vsub.s32 0, %v599
    %v601 = vadd.s32 %v596, 1
    %vm602 = vcmp.gt.s32.totalorder %v601, 0
    %v603 = vsel %vm602, %v601, 0
    %v604 = vshrl.u32 %v603, 5
    %v605 = vand.u32 %v603, 31
    %v606 = vsub.s32 32, %v605
    %v607 = vshrl.u32 683565275, %v606
    %v608 = vshll.u32 683565275, %v605
    %v609 = vshrl.u32 2475754826, %v606
    %v610 = vor.u32 %v608, %v609
    %v611 = vshll.u32 2475754826, %v605
    %v612 = vshrl.u32 2131351028, %v606
    %v613 = vor.u32 %v611, %v612
    %v614 = vshll.u32 2131351028, %v605
    %v615 = vshrl.u32 2102212464, %v606
    %v616 = vor.u32 %v614, %v615
    %v617 = vshll.u32 2102212464, %v605
    %v618 = vshrl.u32 920167782, %v606
    %v619 = vor.u32 %v617, %v618
    %v620 = vshll.u32 920167782, %v605
    %v621 = vshrl.u32 1326507024, %v606
    %v622 = vor.u32 %v620, %v621
    %vm623 = vcmp.lt.s32.totalorder %v604, 1
    %vm624 = vcmp.lt.s32.totalorder %v604, 2
    %vm625 = vcmp.lt.s32.totalorder %v604, 3
    %vm626 = vcmp.lt.s32.totalorder %v604, 4
    %v627 = vsel %vm623, %v607, %v610
    %v628 = vsel %vm626, %v616, 2102212464
    %v629 = vsel %vm625, %v613, %v628
    %v630 = vsel %vm624, %v627, %v629
    %v631 = vsel %vm623, %v610, %v613
    %v632 = vsel %vm626, %v619, 920167782
    %v633 = vsel %vm625, %v616, %v632
    %v634 = vsel %vm624, %v631, %v633
    %v635 = vsel %vm623, %v613, %v616
    %v636 = vsel %vm626, %v622, 1326507024
    %v637 = vsel %vm625, %v619, %v636
    %v638 = vsel %vm624, %v635, %v637
    %v639 = vshll.u32 %v599, 8
    %v640 = vmul.u32.u64.compose %v639, %v638
    %v641 = vextract.low.u32 %v640
    %v642 = vextract.high.u32 %v640
    %v643 = vmul.u32.u64.compose %v639, %v634
    %v644 = vextract.low.u32 %v643
    %v645 = vextract.high.u32 %v643
    %v646 = vmul.u32 %v639, %v630
    %v647 = vadd.s32 %v642, %v644
    %vm648 = vc.u32 %v642, %v644
    %v649 = vadd.s32 %v645, 1
    %v650 = vsel %vm648, %v649, %v645
    %v651 = vadd.s32 %v646, %v650
    %v652 = vadd.s32 %v651, 536870912
    %v653 = vshrl.u32 %v652, 30
    %v654 = vshll.u32 %v653, 30
    %v655 = vsub.s32 %v651, %v654
    %vm656 = vcmp.lt.s32.totalorder %v655, 0
    %v657 = vsub.s32 0, %v655
    %v658 = vsel %vm656, %v657, %v655
    %v659 = vclz %v658
    %v660 = vsub.s32 %v659, 2
    %vm661 = vcmp.gt.s32.totalorder 0, %v660
    %v662 = vsel %vm661, 0, %v660
    %v663 = vsub.s32 32, %v662
    %v664 = vshll.u32 %v655, %v662
    %v665 = vshrl.u32 %v647, %v663
    %v666 = vor.u32 %v664, %v665
    %v667 = vsub.s32 4294967266, %v662
    %v668 = vadd.s32 %v667, 127
    %v669 = vshll.u32 %v668, 23
    %v670 = vor.u32 4788187, %v669
    %v671 = vand.u32 2147483647, %v670
    %v673 = vcvt.s32.f32 %v666
    %v674 = vmul.f32 %v673, %v671
    %v675 = vxor.u32 %v674, 2147483648
    %v676 = vsel %vm593, %v675, %v674
    %v677 = vsub.s32 4, %v653
    %v678 = vsel %vm593, %v677, %v653
    %v679 = vsel %vm592, %v173, %v676
    %v680 = vsel %vm592, 0, %v678
    %v681 = vcosq.f32.pop %v679
    %v682 = vsinq.f32.pop %v679
    %vm683 = vweird.f32 %v173
    %v684 = vadd.s32 %v680, 3
    %v685 = vand.u32 %v684, 3
    %vm686 = vcmp.lt.s32.totalorder %v685, 2
    %vm687 = vcmp.eq.s32.totalorder %v685, 0
    %v688 = vxor.u32 %v682, 2147483648
    %v689 = vsel %vm687, %v681, %v688
    %vm690 = vcmp.eq.s32.totalorder %v685, 2
    %v691 = vxor.u32 %v681, 2147483648
    %v692 = vsel %vm690, %v691, %v682
    %v693 = vsel %vm686, %v689, %v692
    %v694 = vsel %vm683, nan, %v693
    %v695 = vand.u32 2147483647, %v174
    %vm696 = vcmp.le.f32.partialorder %v695, 0.7853982
    %vm697 = vcmp.lt.s32.totalorder %v174, 0
    %v698 = vand.u32 %v174, 2139095040
    %v699 = vshrl.u32 %v698, 23
    %v700 = vsub.s32 %v699, 127
    %v701 = vand.u32 2147483647, %v174
    %v702 = vand.u32 %v701, 8388607
    %v703 = vor.u32 %v702, 8388608
    %v704 = vsub.s32 0, %v703
    %v705 = vadd.s32 %v700, 1
    %vm706 = vcmp.gt.s32.totalorder %v705, 0
    %v707 = vsel %vm706, %v705, 0
    %v708 = vshrl.u32 %v707, 5
    %v709 = vand.u32 %v707, 31
    %v710 = vsub.s32 32, %v709
    %v711 = vshrl.u32 683565275, %v710
    %v712 = vshll.u32 683565275, %v709
    %v713 = vshrl.u32 2475754826, %v710
    %v714 = vor.u32 %v712, %v713
    %v715 = vshll.u32 2475754826, %v709
    %v716 = vshrl.u32 2131351028, %v710
    %v717 = vor.u32 %v715, %v716
    %v718 = vshll.u32 2131351028, %v709
    %v719 = vshrl.u32 2102212464, %v710
    %v720 = vor.u32 %v718, %v719
    %v721 = vshll.u32 2102212464, %v709
    %v722 = vshrl.u32 920167782, %v710
    %v723 = vor.u32 %v721, %v722
    %v724 = vshll.u32 920167782, %v709
    %v725 = vshrl.u32 1326507024, %v710
    %v726 = vor.u32 %v724, %v725
    %vm727 = vcmp.lt.s32.totalorder %v708, 1
    %vm728 = vcmp.lt.s32.totalorder %v708, 2
    %vm729 = vcmp.lt.s32.totalorder %v708, 3
    %vm730 = vcmp.lt.s32.totalorder %v708, 4
    %v731 = vsel %vm727, %v711, %v714
    %v732 = vsel %vm730, %v720, 2102212464
    %v733 = vsel %vm729, %v717, %v732
    %v734 = vsel %vm728, %v731, %v733
    %v735 = vsel %vm727, %v714, %v717
    %v736 = vsel %vm730, %v723, 920167782
    %v737 = vsel %vm729, %v720, %v736
    %v738 = vsel %vm728, %v735, %v737
    %v739 = vsel %vm727, %v717, %v720
    %v740 = vsel %vm730, %v726, 1326507024
    %v741 = vsel %vm729, %v723, %v740
    %v742 = vsel %vm728, %v739, %v741
    %v743 = vshll.u32 %v703, 8
    %v744 = vmul.u32.u64.compose %v743, %v742
    %v745 = vextract.low.u32 %v744
    %v746 = vextract.high.u32 %v744
    %v747 = vmul.u32.u64.compose %v743, %v738
    %v748 = vextract.low.u32 %v747
    %v749 = vextract.high.u32 %v747
    %v750 = vmul.u32 %v743, %v734
    %v751 = vadd.s32 %v746, %v748
    %vm752 = vc.u32 %v746, %v748
    %v753 = vadd.s32 %v749, 1
    %v754 = vsel %vm752, %v753, %v749
    %v755 = vadd.s32 %v750, %v754
    %v756 = vadd.s32 %v755, 536870912
    %v757 = vshrl.u32 %v756, 30
    %v758 = vshll.u32 %v757, 30
    %v759 = vsub.s32 %v755, %v758
    %vm760 = vcmp.lt.s32.totalorder %v759, 0
    %v761 = vsub.s32 0, %v759
    %v762 = vsel %vm760, %v761, %v759
    %v763 = vclz %v762
    %v764 = vsub.s32 %v763, 2
    %vm765 = vcmp.gt.s32.totalorder 0, %v764
    %v766 = vsel %vm765, 0, %v764
    %v767 = vsub.s32 32, %v766
    %v768 = vshll.u32 %v759, %v766
    %v769 = vshrl.u32 %v751, %v767
    %v770 = vor.u32 %v768, %v769
    %v771 = vsub.s32 4294967266, %v766
    %v772 = vadd.s32 %v771, 127
    %v773 = vshll.u32 %v772, 23
    %v774 = vor.u32 4788187, %v773
    %v775 = vand.u32 2147483647, %v774
    %v777 = vcvt.s32.f32 %v770
    %v778 = vmul.f32 %v777, %v775
    %v779 = vxor.u32 %v778, 2147483648
    %v780 = vsel %vm697, %v779, %v778
    %v781 = vsub.s32 4, %v757
    %v782 = vsel %vm697, %v781, %v757
    %v783 = vsel %vm696, %v174, %v780
    %v784 = vsel %vm696, 0, %v782
    %v785 = vcosq.f32.pop %v783
    %v786 = vsinq.f32.pop %v783
    %vm787 = vweird.f32 %v174
    %v788 = vadd.s32 %v784, 3
    %v789 = vand.u32 %v788, 3
    %vm790 = vcmp.lt.s32.totalorder %v789, 2
    %vm791 = vcmp.eq.s32.totalorder %v789, 0
    %v792 = vxor.u32 %v786, 2147483648
    %v793 = vsel %vm791, %v785, %v792
    %vm794 = vcmp.eq.s32.totalorder %v789, 2
    %v795 = vxor.u32 %v785, 2147483648
    %v796 = vsel %vm794, %v795, %v786
    %v797 = vsel %vm790, %v793, %v796
    %v798 = vsel %vm787, nan, %v797
    %v799 = vld [vmem:[%s48] sm:$0xff]
    %v800 = vld [vmem:[%s48 + $0x10] sm:$0xff]
    %v801 = vld [vmem:[%s48 + $0x20] sm:$0xff]
    %v802 = vld [vmem:[%s48 + $0x30] sm:$0xff]
    %v803 = vld [vmem:[%s55] sm:$0xff]
    %v804 = vld [vmem:[%s55 + $0x8] sm:$0xff]
    %v805 = vld [vmem:[%s55 + $0x10] sm:$0xff]
    %v806 = vld [vmem:[%s55 + $0x18] sm:$0xff]
    %808 = vset.pattern.permute.xlu0 0
    %809 = vperm.xlu0 %808, %v803
    %v810 = vpop.permute.xlu0 %809
    %813 = vset.pattern.permute.xlu0 0
    %814 = vperm.xlu0 %813, %v804
    %v815 = vpop.permute.xlu0 %814
    %818 = vset.pattern.permute.xlu0 0
    %819 = vperm.xlu0 %818, %v805
    %v820 = vpop.permute.xlu0 %819
    %823 = vset.pattern.permute.xlu0 0
    %824 = vperm.xlu0 %823, %v806
    %v825 = vpop.permute.xlu0 %824
    %vm827 = vcmask 392192
    %v829 = vsel %vm827, %v799, 0
    %v832 = vsel %vm827, %v800, 0
    %v835 = vsel %vm827, %v801, 0
    %v838 = vsel %vm827, %v802, 0
    %840 = vmatprep.subr.mxu0 0.0
    %841 = vmatpush1.msra.mxu0 %v278
    %842 = vmatprep.subr.mxu0 0.0
    %843 = vmatpush1.msra.mxu0 %v382
    %844 = vmatprep.subr.mxu0 0.0
    %845 = vmatpush1.msra.mxu0 %v486
    %846 = vmatprep.subr.mxu0 0.0
    %847 = vmatpush1.msra.mxu0 %v590
    %848 = vmatprep.subr.mxu0 0.0
    %849 = vmatpush1.msra.mxu0 %v694
    %850 = vmatprep.subr.mxu0 0.0
    %851 = vmatpush1.msra.mxu0 %v798
    %852 = vmatprep.subr.mxu0 0.0
    %853 = vmatpush1.msra.mxu0 0.0
    %854 = vmatprep.subr.mxu0 0.0
    %855 = vmatpush1.msra.mxu0 0.0
    %856 = vmatprep.subr.mxu0 0.0
    %857 = vmatpush1.msra.mxu0 0.0
    %858 = vmatprep.subr.mxu0 0.0
    %859 = vmatpush1.msra.mxu0 0.0
    %860 = vmatprep.subr.mxu0 0.0
    %861 = vmatpush1.msra.mxu0 0.0
    %862 = vmatprep.subr.mxu0 0.0
    %863 = vmatpush1.msra.mxu0 0.0
    %864 = vmatprep.subr.mxu0 0.0
    %865 = vmatpush1.msra.mxu0 0.0
    %866 = vmatprep.subr.mxu0 0.0
    %867 = vmatpush1.msra.mxu0 0.0
    %868 = vmatprep.subr.mxu0 0.0
    %869 = vmatpush1.msra.mxu0 0.0
    %870 = vmatprep.subr.mxu0 0.0
    %871 = vmatpush1.msra.mxu0 0.0
    %872 = vmatprep.subr.mxu0 0.0
    %873 = vmatpush1.msra.mxu0 0.0
    %874 = vmatprep.subr.mxu0 0.0
    %875 = vmatpush1.msra.mxu0 0.0
    %876 = vmatprep.subr.mxu0 0.0
    %877 = vmatpush1.msra.mxu0 0.0
    %878 = vmatprep.subr.mxu0 0.0
    %879 = vmatpush1.msra.mxu0 0.0
    %880 = vmatprep.subr.mxu0 0.0
    %881 = vmatpush1.msra.mxu0 0.0
    %882 = vmatprep.subr.mxu0 0.0
    %883 = vmatpush1.msra.mxu0 0.0
    %884 = vmatprep.subr.mxu0 0.0
    %885 = vmatpush1.msra.mxu0 0.0
    %886 = vmatprep.subr.mxu0 0.0
    %887 = vmatpush1.msra.mxu0 0.0
    %888 = vmatprep.subr.mxu0 0.0
    %889 = vmatpush1.msra.mxu0 0.0
    %890 = vmatprep.subr.mxu0 0.0
    %891 = vmatpush1.msra.mxu0 0.0
    %892 = vmatprep.subr.mxu0 0.0
    %893 = vmatpush1.msra.mxu0 0.0
    %894 = vmatprep.subr.mxu0 0.0
    %895 = vmatpush1.msra.mxu0 0.0
    %896 = vmatprep.subr.mxu0 0.0
    %897 = vmatpush1.msra.mxu0 0.0
    %898 = vmatprep.subr.mxu0 0.0
    %899 = vmatpush1.msra.mxu0 0.0
    %900 = vmatprep.subr.mxu0 0.0
    %901 = vmatpush1.msra.mxu0 0.0
    %902 = vmatprep.subr.mxu0 0.0
    %903 = vmatpush1.msra.mxu0 0.0
    %904 = vmatprep.mubr.f32.mxu0 0.0
    %905 = vmatmul.mubr.f32.gmra.mrb[0].mxu0 %v829
    %v906 = vpop.f32.mrb[0].mxu0
    %v907 = vadd.f32 %v810, %v906
    %v908 = vpop.f32.mrb[0].mxu0
    %909 = vmatprep.mubr.f32.mxu0 0.0
    %910 = vmatmul.mubr.f32.gmra.mrb[0].mxu0 %v832
    %v911 = vpop.f32.mrb[0].mxu0
    %v912 = vadd.f32 %v815, %v911
    %v913 = vpop.f32.mrb[0].mxu0
    %914 = vmatprep.mubr.f32.mxu0 0.0
    %915 = vmatmul.mubr.f32.gmra.mrb[0].mxu0 %v835
    %v916 = vpop.f32.mrb[0].mxu0
    %v917 = vadd.f32 %v820, %v916
    %v918 = vpop.f32.mrb[0].mxu0
    %919 = vmatprep.mubr.f32.mxu0 0.0
    %920 = vmatmul.mubr.f32.gmra.mrb[0].mxu0 %v838
    %v921 = vpop.f32.mrb[0].mxu0
    %v922 = vadd.f32 %v825, %v921
    %v923 = vpop.f32.mrb[0].mxu0
    %924 = vdwg.mxu0
    %v925 = vmul.f32 %v907, 0.5
    %v926 = vmul.f32 %v912, 0.5
    %v927 = vmul.f32 %v917, 0.5
    %v928 = vmul.f32 %v922, 0.5
    %v929 = vmul.f32 %v907, 0.70710677
    %v930 = vmul.f32 %v912, 0.70710677
    %v931 = vmul.f32 %v917, 0.70710677
    %v932 = vmul.f32 %v922, 0.70710677
    %v933 = verf.f32.pop %v929
    %v934 = verf.f32.pop %v930
    %v935 = verf.f32.pop %v931
    %v936 = verf.f32.pop %v932
    %v937 = vadd.f32 %v933, 1.0
    %v938 = vadd.f32 %v934, 1.0
    %v939 = vadd.f32 %v935, 1.0
    %v940 = vadd.f32 %v936, 1.0
    %v941 = vmul.f32 %v925, %v937
    %v942 = vmul.f32 %v926, %v938
    %v943 = vmul.f32 %v927, %v939
    %v944 = vmul.f32 %v928, %v940
    %945 = vset.pattern.permute.xlu0 1
    %946 = vperm.xlu0 %945, %v803
    %v947 = vpop.permute.xlu0 %946
    %949 = vset.pattern.permute.xlu0 1
    %950 = vperm.xlu0 %949, %v804
    %v951 = vpop.permute.xlu0 %950
    %953 = vset.pattern.permute.xlu0 1
    %954 = vperm.xlu0 %953, %v805
    %v955 = vpop.permute.xlu0 %954
    %957 = vset.pattern.permute.xlu0 1
    %958 = vperm.xlu0 %957, %v806
    %v959 = vpop.permute.xlu0 %958
    %961 = vrot.lane.b32.xlu0 %v799, 80
    %v962 = vpop.permute.xlu0 %961
    %963 = vrot.lane.b32.xlu0 %v800, 80
    %v964 = vpop.permute.xlu0 %963
    %965 = vrot.lane.b32.xlu0 %v801, 80
    %v966 = vpop.permute.xlu0 %965
    %967 = vrot.lane.b32.xlu0 %v802, 80
    %v968 = vpop.permute.xlu0 %967
    %vm969 = vcmask 261120
    %v970 = vsel %vm969, %v962, 0
    %v972 = vsel %vm969, %v964, 0
    %v974 = vsel %vm969, %v966, 0
    %v976 = vsel %vm969, %v968, 0
    %978 = vmatprep.subr.mxu0 0.0
    %979 = vmatpush1.msra.mxu0 %v941
    %980 = vmatprep.subr.mxu0 0.0
    %981 = vmatpush1.msra.mxu0 %v942
    %982 = vmatprep.subr.mxu0 0.0
    %983 = vmatpush1.msra.mxu0 %v943
    %984 = vmatprep.subr.mxu0 0.0
    %985 = vmatpush1.msra.mxu0 %v944
    %986 = vmatprep.subr.mxu0 0.0
    %987 = vmatpush1.msra.mxu0 0.0
    %988 = vmatprep.subr.mxu0 0.0
    %989 = vmatpush1.msra.mxu0 0.0
    %990 = vmatprep.subr.mxu0 0.0
    %991 = vmatpush1.msra.mxu0 0.0
    %992 = vmatprep.subr.mxu0 0.0
    %993 = vmatpush1.msra.mxu0 0.0
    %994 = vmatprep.subr.mxu0 0.0
    %995 = vmatpush1.msra.mxu0 0.0
    %996 = vmatprep.subr.mxu0 0.0
    %997 = vmatpush1.msra.mxu0 0.0
    %998 = vmatprep.subr.mxu0 0.0
    %999 = vmatpush1.msra.mxu0 0.0
    %1000 = vmatprep.subr.mxu0 0.0
    %1001 = vmatpush1.msra.mxu0 0.0
    %1002 = vmatprep.subr.mxu0 0.0
    %1003 = vmatpush1.msra.mxu0 0.0
    %1004 = vmatprep.subr.mxu0 0.0
    %1005 = vmatpush1.msra.mxu0 0.0
    %1006 = vmatprep.subr.mxu0 0.0
    %1007 = vmatpush1.msra.mxu0 0.0
    %1008 = vmatprep.subr.mxu0 0.0
    %1009 = vmatpush1.msra.mxu0 0.0
    %1010 = vmatprep.subr.mxu0 0.0
    %1011 = vmatpush1.msra.mxu0 0.0
    %1012 = vmatprep.subr.mxu0 0.0
    %1013 = vmatpush1.msra.mxu0 0.0
    %1014 = vmatprep.subr.mxu0 0.0
    %1015 = vmatpush1.msra.mxu0 0.0
    %1016 = vmatprep.subr.mxu0 0.0
    %1017 = vmatpush1.msra.mxu0 0.0
    %1018 = vmatprep.subr.mxu0 0.0
    %1019 = vmatpush1.msra.mxu0 0.0
    %1020 = vmatprep.subr.mxu0 0.0
    %1021 = vmatpush1.msra.mxu0 0.0
    %1022 = vmatprep.subr.mxu0 0.0
    %1023 = vmatpush1.msra.mxu0 0.0
    %1024 = vmatprep.subr.mxu0 0.0
    %1025 = vmatpush1.msra.mxu0 0.0
    %1026 = vmatprep.subr.mxu0 0.0
    %1027 = vmatpush1.msra.mxu0 0.0
    %1028 = vmatprep.subr.mxu0 0.0
    %1029 = vmatpush1.msra.mxu0 0.0
    %1030 = vmatprep.subr.mxu0 0.0
    %1031 = vmatpush1.msra.mxu0 0.0
    %1032 = vmatprep.subr.mxu0 0.0
    %1033 = vmatpush1.msra.mxu0 0.0
    %1034 = vmatprep.subr.mxu0 0.0
    %1035 = vmatpush1.msra.mxu0 0.0
    %1036 = vmatprep.subr.mxu0 0.0
    %1037 = vmatpush1.msra.mxu0 0.0
    %1038 = vmatprep.subr.mxu0 0.0
    %1039 = vmatpush1.msra.mxu0 0.0
    %1040 = vmatprep.subr.mxu0 0.0
    %1041 = vmatpush1.msra.mxu0 0.0
    %1042 = vmatprep.mubr.f32.mxu0 0.0
    %1043 = vmatmul.mubr.f32.gmra.mrb[0].mxu0 %v970
    %v1044 = vpop.f32.mrb[0].mxu0
    %v1045 = vadd.f32 %v947, %v1044
    %v1046 = vpop.f32.mrb[0].mxu0
    %1047 = vmatprep.mubr.f32.mxu0 0.0
    %1048 = vmatmul.mubr.f32.gmra.mrb[0].mxu0 %v972
    %v1049 = vpop.f32.mrb[0].mxu0
    %v1050 = vadd.f32 %v951, %v1049
    %v1051 = vpop.f32.mrb[0].mxu0
    %1052 = vmatprep.mubr.f32.mxu0 0.0
    %1053 = vmatmul.mubr.f32.gmra.mrb[0].mxu0 %v974
    %v1054 = vpop.f32.mrb[0].mxu0
    %v1055 = vadd.f32 %v955, %v1054
    %v1056 = vpop.f32.mrb[0].mxu0
    %1057 = vmatprep.mubr.f32.mxu0 0.0
    %1058 = vmatmul.mubr.f32.gmra.mrb[0].mxu0 %v976
    %v1059 = vpop.f32.mrb[0].mxu0
    %v1060 = vadd.f32 %v959, %v1059
    %v1061 = vpop.f32.mrb[0].mxu0
    %1062 = vdwg.mxu0
    %v1063 = vmul.f32 %v1045, 0.5
    %v1064 = vmul.f32 %v1050, 0.5
    %v1065 = vmul.f32 %v1055, 0.5
    %v1066 = vmul.f32 %v1060, 0.5
    %v1067 = vmul.f32 %v1045, 0.70710677
    %v1068 = vmul.f32 %v1050, 0.70710677
    %v1069 = vmul.f32 %v1055, 0.70710677
    %v1070 = vmul.f32 %v1060, 0.70710677
    %v1071 = verf.f32.pop %v1067
    %v1072 = verf.f32.pop %v1068
    %v1073 = verf.f32.pop %v1069
    %v1074 = verf.f32.pop %v1070
    %v1075 = vadd.f32 %v1071, 1.0
    %v1076 = vadd.f32 %v1072, 1.0
    %v1077 = vadd.f32 %v1073, 1.0
    %v1078 = vadd.f32 %v1074, 1.0
    %v1079 = vmul.f32 %v1063, %v1075
    %v1080 = vmul.f32 %v1064, %v1076
    %v1081 = vmul.f32 %v1065, %v1077
    %v1082 = vmul.f32 %v1066, %v1078
    %v1083 = vadd.f32 %v941, %v1079
    %v1084 = vadd.f32 %v942, %v1080
    %v1085 = vadd.f32 %v943, %v1081
    %v1086 = vadd.f32 %v944, %v1082
    %1087 = vset.pattern.permute.xlu0 2
    %1088 = vperm.xlu0 %1087, %v803
    %v1089 = vpop.permute.xlu0 %1088
    %1091 = vset.pattern.permute.xlu0 2
    %1092 = vperm.xlu0 %1091, %v804
    %v1093 = vpop.permute.xlu0 %1092
    %1095 = vset.pattern.permute.xlu0 2
    %1096 = vperm.xlu0 %1095, %v805
    %v1097 = vpop.permute.xlu0 %1096
    %1099 = vset.pattern.permute.xlu0 2
    %1100 = vperm.xlu0 %1099, %v806
    %v1101 = vpop.permute.xlu0 %1100
    %1103 = vrot.lane.b32.xlu0 %v799, 48
    %v1104 = vpop.permute.xlu0 %1103
    %1105 = vrot.lane.b32.xlu0 %v800, 48
    %v1106 = vpop.permute.xlu0 %1105
    %1107 = vrot.lane.b32.xlu0 %v801, 48
    %v1108 = vpop.permute.xlu0 %1107
    %1109 = vrot.lane.b32.xlu0 %v802, 48
    %v1110 = vpop.permute.xlu0 %1109
    %v1111 = vsel %vm969, %v1104, 0
    %v1113 = vsel %vm969, %v1106, 0
    %v1115 = vsel %vm969, %v1108, 0
    %v1117 = vsel %vm969, %v1110, 0
    %1119 = vmatprep.subr.mxu0 0.0
    %1120 = vmatpush1.msra.mxu0 %v1083
    %1121 = vmatprep.subr.mxu0 0.0
    %1122 = vmatpush1.msra.mxu0 %v1084
    %1123 = vmatprep.subr.mxu0 0.0
    %1124 = vmatpush1.msra.mxu0 %v1085
    %1125 = vmatprep.subr.mxu0 0.0
    %1126 = vmatpush1.msra.mxu0 %v1086
    %1127 = vmatprep.subr.mxu0 0.0
    %1128 = vmatpush1.msra.mxu0 0.0
    %1129 = vmatprep.subr.mxu0 0.0
    %1130 = vmatpush1.msra.mxu0 0.0
    %1131 = vmatprep.subr.mxu0 0.0
    %1132 = vmatpush1.msra.mxu0 0.0
    %1133 = vmatprep.subr.mxu0 0.0
    %1134 = vmatpush1.msra.mxu0 0.0
    %1135 = vmatprep.subr.mxu0 0.0
    %1136 = vmatpush1.msra.mxu0 0.0
    %1137 = vmatprep.subr.mxu0 0.0
    %1138 = vmatpush1.msra.mxu0 0.0
    %1139 = vmatprep.subr.mxu0 0.0
    %1140 = vmatpush1.msra.mxu0 0.0
    %1141 = vmatprep.subr.mxu0 0.0
    %1142 = vmatpush1.msra.mxu0 0.0
    %1143 = vmatprep.subr.mxu0 0.0
    %1144 = vmatpush1.msra.mxu0 0.0
    %1145 = vmatprep.subr.mxu0 0.0
    %1146 = vmatpush1.msra.mxu0 0.0
    %1147 = vmatprep.subr.mxu0 0.0
    %1148 = vmatpush1.msra.mxu0 0.0
    %1149 = vmatprep.subr.mxu0 0.0
    %1150 = vmatpush1.msra.mxu0 0.0
    %1151 = vmatprep.subr.mxu0 0.0
    %1152 = vmatpush1.msra.mxu0 0.0
    %1153 = vmatprep.subr.mxu0 0.0
    %1154 = vmatpush1.msra.mxu0 0.0
    %1155 = vmatprep.subr.mxu0 0.0
    %1156 = vmatpush1.msra.mxu0 0.0
    %1157 = vmatprep.subr.mxu0 0.0
    %1158 = vmatpush1.msra.mxu0 0.0
    %1159 = vmatprep.subr.mxu0 0.0
    %1160 = vmatpush1.msra.mxu0 0.0
    %1161 = vmatprep.subr.mxu0 0.0
    %1162 = vmatpush1.msra.mxu0 0.0
    %1163 = vmatprep.subr.mxu0 0.0
    %1164 = vmatpush1.msra.mxu0 0.0
    %1165 = vmatprep.subr.mxu0 0.0
    %1166 = vmatpush1.msra.mxu0 0.0
    %1167 = vmatprep.subr.mxu0 0.0
    %1168 = vmatpush1.msra.mxu0 0.0
    %1169 = vmatprep.subr.mxu0 0.0
    %1170 = vmatpush1.msra.mxu0 0.0
    %1171 = vmatprep.subr.mxu0 0.0
    %1172 = vmatpush1.msra.mxu0 0.0
    %1173 = vmatprep.subr.mxu0 0.0
    %1174 = vmatpush1.msra.mxu0 0.0
    %1175 = vmatprep.subr.mxu0 0.0
    %1176 = vmatpush1.msra.mxu0 0.0
    %1177 = vmatprep.subr.mxu0 0.0
    %1178 = vmatpush1.msra.mxu0 0.0
    %1179 = vmatprep.subr.mxu0 0.0
    %1180 = vmatpush1.msra.mxu0 0.0
    %1181 = vmatprep.subr.mxu0 0.0
    %1182 = vmatpush1.msra.mxu0 0.0
    %1183 = vmatprep.mubr.f32.mxu0 0.0
    %1184 = vmatmul.mubr.f32.gmra.mrb[0].mxu0 %v1111
    %v1185 = vpop.f32.mrb[0].mxu0
    %v1186 = vadd.f32 %v1089, %v1185
    %v1187 = vpop.f32.mrb[0].mxu0
    %1188 = vmatprep.mubr.f32.mxu0 0.0
    %1189 = vmatmul.mubr.f32.gmra.mrb[0].mxu0 %v1113
    %v1190 = vpop.f32.mrb[0].mxu0
    %v1191 = vadd.f32 %v1093, %v1190
    %v1192 = vpop.f32.mrb[0].mxu0
    %1193 = vmatprep.mubr.f32.mxu0 0.0
    %1194 = vmatmul.mubr.f32.gmra.mrb[0].mxu0 %v1115
    %v1195 = vpop.f32.mrb[0].mxu0
    %v1196 = vadd.f32 %v1097, %v1195
    %v1197 = vpop.f32.mrb[0].mxu0
    %1198 = vmatprep.mubr.f32.mxu0 0.0
    %1199 = vmatmul.mubr.f32.gmra.mrb[0].mxu0 %v1117
    %v1200 = vpop.f32.mrb[0].mxu0
    %v1201 = vadd.f32 %v1101, %v1200
    %v1202 = vpop.f32.mrb[0].mxu0
    %1203 = vdwg.mxu0
    %v1204 = vmul.f32 %v1186, 0.5
    %v1205 = vmul.f32 %v1191, 0.5
    %v1206 = vmul.f32 %v1196, 0.5
    %v1207 = vmul.f32 %v1201, 0.5
    %v1208 = vmul.f32 %v1186, 0.70710677
    %v1209 = vmul.f32 %v1191, 0.70710677
    %v1210 = vmul.f32 %v1196, 0.70710677
    %v1211 = vmul.f32 %v1201, 0.70710677
    %v1212 = verf.f32.pop %v1208
    %v1213 = verf.f32.pop %v1209
    %v1214 = verf.f32.pop %v1210
    %v1215 = verf.f32.pop %v1211
    %v1216 = vadd.f32 %v1212, 1.0
    %v1217 = vadd.f32 %v1213, 1.0
    %v1218 = vadd.f32 %v1214, 1.0
    %v1219 = vadd.f32 %v1215, 1.0
    %v1220 = vmul.f32 %v1204, %v1216
    %v1221 = vmul.f32 %v1205, %v1217
    %v1222 = vmul.f32 %v1206, %v1218
    %v1223 = vmul.f32 %v1207, %v1219
    %v1224 = vadd.f32 %v1083, %v1220
    %v1225 = vadd.f32 %v1084, %v1221
    %v1226 = vadd.f32 %v1085, %v1222
    %v1227 = vadd.f32 %v1086, %v1223
    %v1228 = vld [vmem:[%s48] sm:$0xff]
    %v1229 = vld [vmem:[%s48 + $0x8] sm:$0xff]
    %v1230 = vld [vmem:[%s48 + $0x10] sm:$0xff]
    %v1231 = vld [vmem:[%s48 + $0x18] sm:$0xff]
    %v1232 = vld [vmem:[%s48 + $0x20] sm:$0xff]
    %v1233 = vld [vmem:[%s48 + $0x28] sm:$0xff]
    %v1234 = vld [vmem:[%s48 + $0x30] sm:$0xff]
    %v1235 = vld [vmem:[%s48 + $0x38] sm:$0xff]
    %1236 = vset.pattern.permute.xlu0 3
    %1237 = vperm.xlu0 %1236, %v803
    %v1238 = vpop.permute.xlu0 %1237
    %1240 = vset.pattern.permute.xlu0 3
    %1241 = vperm.xlu0 %1240, %v804
    %v1242 = vpop.permute.xlu0 %1241
    %1244 = vset.pattern.permute.xlu0 3
    %1245 = vperm.xlu0 %1244, %v805
    %v1246 = vpop.permute.xlu0 %1245
    %1248 = vset.pattern.permute.xlu0 3
    %1249 = vperm.xlu0 %1248, %v806
    %v1250 = vpop.permute.xlu0 %1249
    %1260 = vrot.lane.b32.xlu0 %v1228, 16
    %v1261 = vpop.permute.xlu0 %1260
    %1262 = vrot.lane.b32.xlu0 %v1229, 16
    %v1263 = vpop.permute.xlu0 %1262
    %1264 = vrot.lane.b32.xlu0 %v1230, 16
    %v1265 = vpop.permute.xlu0 %1264
    %1266 = vrot.lane.b32.xlu0 %v1231, 16
    %v1267 = vpop.permute.xlu0 %1266
    %1268 = vrot.lane.b32.xlu0 %v1232, 16
    %v1269 = vpop.permute.xlu0 %1268
    %1270 = vrot.lane.b32.xlu0 %v1233, 16
    %v1271 = vpop.permute.xlu0 %1270
    %1272 = vrot.lane.b32.xlu0 %v1234, 16
    %v1273 = vpop.permute.xlu0 %1272
    %1274 = vrot.lane.b32.xlu0 %v1235, 16
    %v1275 = vpop.permute.xlu0 %1274
    %vm1276 = vcmask 130048
    %v1277 = vsel %vm1276, %v1261, %v1263
    %v1278 = vsel %vm1276, %v1265, %v1267
    %v1279 = vsel %vm1276, %v1269, %v1271
    %v1280 = vsel %vm1276, %v1273, %v1275
    %v1281 = vsel %vm969, %v1277, 0
    %v1283 = vsel %vm969, %v1278, 0
    %v1285 = vsel %vm969, %v1279, 0
    %v1287 = vsel %vm969, %v1280, 0
    %1289 = vmatprep.subr.mxu0 0.0
    %1290 = vmatpush1.msra.mxu0 %v1224
    %1291 = vmatprep.subr.mxu0 0.0
    %1292 = vmatpush1.msra.mxu0 %v1225
    %1293 = vmatprep.subr.mxu0 0.0
    %1294 = vmatpush1.msra.mxu0 %v1226
    %1295 = vmatprep.subr.mxu0 0.0
    %1296 = vmatpush1.msra.mxu0 %v1227
    %1297 = vmatprep.subr.mxu0 0.0
    %1298 = vmatpush1.msra.mxu0 0.0
    %1299 = vmatprep.subr.mxu0 0.0
    %1300 = vmatpush1.msra.mxu0 0.0
    %1301 = vmatprep.subr.mxu0 0.0
    %1302 = vmatpush1.msra.mxu0 0.0
    %1303 = vmatprep.subr.mxu0 0.0
    %1304 = vmatpush1.msra.mxu0 0.0
    %1305 = vmatprep.subr.mxu0 0.0
    %1306 = vmatpush1.msra.mxu0 0.0
    %1307 = vmatprep.subr.mxu0 0.0
    %1308 = vmatpush1.msra.mxu0 0.0
    %1309 = vmatprep.subr.mxu0 0.0
    %1310 = vmatpush1.msra.mxu0 0.0
    %1311 = vmatprep.subr.mxu0 0.0
    %1312 = vmatpush1.msra.mxu0 0.0
    %1313 = vmatprep.subr.mxu0 0.0
    %1314 = vmatpush1.msra.mxu0 0.0
    %1315 = vmatprep.subr.mxu0 0.0
    %1316 = vmatpush1.msra.mxu0 0.0
    %1317 = vmatprep.subr.mxu0 0.0
    %1318 = vmatpush1.msra.mxu0 0.0
    %1319 = vmatprep.subr.mxu0 0.0
    %1320 = vmatpush1.msra.mxu0 0.0
    %1321 = vmatprep.subr.mxu0 0.0
    %1322 = vmatpush1.msra.mxu0 0.0
    %1323 = vmatprep.subr.mxu0 0.0
    %1324 = vmatpush1.msra.mxu0 0.0
    %1325 = vmatprep.subr.mxu0 0.0
    %1326 = vmatpush1.msra.mxu0 0.0
    %1327 = vmatprep.subr.mxu0 0.0
    %1328 = vmatpush1.msra.mxu0 0.0
    %1329 = vmatprep.subr.mxu0 0.0
    %1330 = vmatpush1.msra.mxu0 0.0
    %1331 = vmatprep.subr.mxu0 0.0
    %1332 = vmatpush1.msra.mxu0 0.0
    %1333 = vmatprep.subr.mxu0 0.0
    %1334 = vmatpush1.msra.mxu0 0.0
    %1335 = vmatprep.subr.mxu0 0.0
    %1336 = vmatpush1.msra.mxu0 0.0
    %1337 = vmatprep.subr.mxu0 0.0
    %1338 = vmatpush1.msra.mxu0 0.0
    %1339 = vmatprep.subr.mxu0 0.0
    %1340 = vmatpush1.msra.mxu0 0.0
    %1341 = vmatprep.subr.mxu0 0.0
    %1342 = vmatpush1.msra.mxu0 0.0
    %1343 = vmatprep.subr.mxu0 0.0
    %1344 = vmatpush1.msra.mxu0 0.0
    %1345 = vmatprep.subr.mxu0 0.0
    %1346 = vmatpush1.msra.mxu0 0.0
    %1347 = vmatprep.subr.mxu0 0.0
    %1348 = vmatpush1.msra.mxu0 0.0
    %1349 = vmatprep.subr.mxu0 0.0
    %1350 = vmatpush1.msra.mxu0 0.0
    %1351 = vmatprep.subr.mxu0 0.0
    %1352 = vmatpush1.msra.mxu0 0.0
    %1353 = vmatprep.mubr.f32.mxu0 0.0
    %1354 = vmatmul.mubr.f32.gmra.mrb[0].mxu0 %v1281
    %v1355 = vpop.f32.mrb[0].mxu0
    %v1356 = vadd.f32 %v1238, %v1355
    %v1357 = vpop.f32.mrb[0].mxu0
    %1358 = vmatprep.mubr.f32.mxu0 0.0
    %1359 = vmatmul.mubr.f32.gmra.mrb[0].mxu0 %v1283
    %v1360 = vpop.f32.mrb[0].mxu0
    %v1361 = vadd.f32 %v1242, %v1360
    %v1362 = vpop.f32.mrb[0].mxu0
    %1363 = vmatprep.mubr.f32.mxu0 0.0
    %1364 = vmatmul.mubr.f32.gmra.mrb[0].mxu0 %v1285
    %v1365 = vpop.f32.mrb[0].mxu0
    %v1366 = vadd.f32 %v1246, %v1365
    %v1367 = vpop.f32.mrb[0].mxu0
    %1368 = vmatprep.mubr.f32.mxu0 0.0
    %1369 = vmatmul.mubr.f32.gmra.mrb[0].mxu0 %v1287
    %v1370 = vpop.f32.mrb[0].mxu0
    %v1371 = vadd.f32 %v1250, %v1370
    %v1372 = vpop.f32.mrb[0].mxu0
    %1373 = vdwg.mxu0
    %v1374 = vmul.f32 %v1356, 0.5
    %v1375 = vmul.f32 %v1361, 0.5
    %v1376 = vmul.f32 %v1366, 0.5
    %v1377 = vmul.f32 %v1371, 0.5
    %v1378 = vmul.f32 %v1356, 0.70710677
    %v1379 = vmul.f32 %v1361, 0.70710677
    %v1380 = vmul.f32 %v1366, 0.70710677
    %v1381 = vmul.f32 %v1371, 0.70710677
    %v1382 = verf.f32.pop %v1378
    %v1383 = verf.f32.pop %v1379
    %v1384 = verf.f32.pop %v1380
    %v1385 = verf.f32.pop %v1381
    %v1386 = vadd.f32 %v1382, 1.0
    %v1387 = vadd.f32 %v1383, 1.0
    %v1388 = vadd.f32 %v1384, 1.0
    %v1389 = vadd.f32 %v1385, 1.0
    %v1390 = vmul.f32 %v1374, %v1386
    %v1391 = vmul.f32 %v1375, %v1387
    %v1392 = vmul.f32 %v1376, %v1388
    %v1393 = vmul.f32 %v1377, %v1389
    %v1394 = vadd.f32 %v1224, %v1390
    %v1395 = vadd.f32 %v1225, %v1391
    %v1396 = vadd.f32 %v1226, %v1392
    %v1397 = vadd.f32 %v1227, %v1393
    %v1398 = vld [vmem:[%s55] sm:$0x3]
    %1399 = vrot.lane.b32.xlu0 %v1229, 112
    %v1400 = vpop.permute.xlu0 %1399
    %1401 = vrot.lane.b32.xlu0 %v1231, 112
    %v1402 = vpop.permute.xlu0 %1401
    %1403 = vrot.lane.b32.xlu0 %v1233, 112
    %v1404 = vpop.permute.xlu0 %1403
    %1405 = vrot.lane.b32.xlu0 %v1235, 112
    %v1406 = vpop.permute.xlu0 %1405
    %v1407 = vsel %vm969, %v1400, 0
    %v1409 = vsel %vm969, %v1402, 0
    %v1411 = vsel %vm969, %v1404, 0
    %v1413 = vsel %vm969, %v1406, 0
    %1415 = vmatprep.subr.mxu0 0.0
    %1416 = vmatpush1.msra.mxu0 %v1394
    %1417 = vmatprep.subr.mxu0 0.0
    %1418 = vmatpush1.msra.mxu0 %v1395
    %1419 = vmatprep.subr.mxu0 0.0
    %1420 = vmatpush1.msra.mxu0 %v1396
    %1421 = vmatprep.subr.mxu0 0.0
    %1422 = vmatpush1.msra.mxu0 %v1397
    %1423 = vmatprep.subr.mxu0 0.0
    %1424 = vmatpush1.msra.mxu0 0.0
    %1425 = vmatprep.subr.mxu0 0.0
    %1426 = vmatpush1.msra.mxu0 0.0
    %1427 = vmatprep.subr.mxu0 0.0
    %1428 = vmatpush1.msra.mxu0 0.0
    %1429 = vmatprep.subr.mxu0 0.0
    %1430 = vmatpush1.msra.mxu0 0.0
    %1431 = vmatprep.subr.mxu0 0.0
    %1432 = vmatpush1.msra.mxu0 0.0
    %1433 = vmatprep.subr.mxu0 0.0
    %1434 = vmatpush1.msra.mxu0 0.0
    %1435 = vmatprep.subr.mxu0 0.0
    %1436 = vmatpush1.msra.mxu0 0.0
    %1437 = vmatprep.subr.mxu0 0.0
    %1438 = vmatpush1.msra.mxu0 0.0
    %1439 = vmatprep.subr.mxu0 0.0
    %1440 = vmatpush1.msra.mxu0 0.0
    %1441 = vmatprep.subr.mxu0 0.0
    %1442 = vmatpush1.msra.mxu0 0.0
    %1443 = vmatprep.subr.mxu0 0.0
    %1444 = vmatpush1.msra.mxu0 0.0
    %1445 = vmatprep.subr.mxu0 0.0
    %1446 = vmatpush1.msra.mxu0 0.0
    %1447 = vmatprep.subr.mxu0 0.0
    %1448 = vmatpush1.msra.mxu0 0.0
    %1449 = vmatprep.subr.mxu0 0.0
    %1450 = vmatpush1.msra.mxu0 0.0
    %1451 = vmatprep.subr.mxu0 0.0
    %1452 = vmatpush1.msra.mxu0 0.0
    %1453 = vmatprep.subr.mxu0 0.0
    %1454 = vmatpush1.msra.mxu0 0.0
    %1455 = vmatprep.subr.mxu0 0.0
    %1456 = vmatpush1.msra.mxu0 0.0
    %1457 = vmatprep.subr.mxu0 0.0
    %1458 = vmatpush1.msra.mxu0 0.0
    %1459 = vmatprep.subr.mxu0 0.0
    %1460 = vmatpush1.msra.mxu0 0.0
    %1461 = vmatprep.subr.mxu0 0.0
    %1462 = vmatpush1.msra.mxu0 0.0
    %1463 = vmatprep.subr.mxu0 0.0
    %1464 = vmatpush1.msra.mxu0 0.0
    %1465 = vmatprep.subr.mxu0 0.0
    %1466 = vmatpush1.msra.mxu0 0.0
    %1467 = vmatprep.subr.mxu0 0.0
    %1468 = vmatpush1.msra.mxu0 0.0
    %1469 = vmatprep.subr.mxu0 0.0
    %1470 = vmatpush1.msra.mxu0 0.0
    %1471 = vmatprep.subr.mxu0 0.0
    %1472 = vmatpush1.msra.mxu0 0.0
    %1473 = vmatprep.subr.mxu0 0.0
    %1474 = vmatpush1.msra.mxu0 0.0
    %1475 = vmatprep.subr.mxu0 0.0
    %1476 = vmatpush1.msra.mxu0 0.0
    %1477 = vmatprep.subr.mxu0 0.0
    %1478 = vmatpush1.msra.mxu0 0.0
    %1479 = vmatprep.mubr.f32.mxu0 0.0
    %1480 = vmatmul.mubr.f32.gmra.mrb[0].mxu0 %v1407
    %v1481 = vpop.f32.mrb[0].mxu0
    %v1482 = vadd.f32 0.0, %v1481
    %v1483 = vpop.f32.mrb[0].mxu0
    %1484 = vmatprep.mubr.f32.mxu0 0.0
    %1485 = vmatmul.mubr.f32.gmra.mrb[0].mxu0 %v1409
    %v1486 = vpop.f32.mrb[0].mxu0
    %v1487 = vpop.f32.mrb[0].mxu0
    %1488 = vmatprep.mubr.f32.mxu0 0.0
    %1489 = vmatmul.mubr.f32.gmra.mrb[0].mxu0 %v1411
    %v1490 = vpop.f32.mrb[0].mxu0
    %v1491 = vpop.f32.mrb[0].mxu0
    %1492 = vmatprep.mubr.f32.mxu0 0.0
    %1493 = vmatmul.mubr.f32.gmra.mrb[0].mxu0 %v1413
    %v1494 = vpop.f32.mrb[0].mxu0
    %v1495 = vpop.f32.mrb[0].mxu0
    %1496 = vdwg.mxu0
    %1498 = vset.pattern.permute.xlu0 4
    %1499 = vperm.xlu0 %1498, %v1398
    %v1500 = vpop.permute.xlu0 %1499
    %v1502 = vadd.f32 %v1482, %v1500
    %vm1503 = vcmask 58368
    %1504 = vst.msk [vmem:[#allocation4] sm:$0x3] %vm1503, %v1502
    // Predicated region
    $region14: #{mlpsps_forward.1} parent=1 // pred_check
      _
    $region15: #{mlpsps_forward.1} parent=1 // pred_check_branch
      %1506 = sbr.rel (0) target = $region17
    $region16: #{mlpsps_forward.1} parent=1 // pred_region
      %s1508 = ssub.s32 32, 32
      %1509 = vsyncadd [#allocation5], %s1508
      %s1511 = sshll.u32 [#allocation4], 4
      %s1512 = int_to_ptr.vmem [resolvable:$true] %s1511
      %1514 = dma.vmem_to_hbm [thread:$0]  %s1512, 32, %s4, [#allocation5]
    $region17: #{mlpsps_forward.1} parent=1 // pred_fallthru
      _
    // Predicated region
    $region18: #{mlpsps_forward.1} parent=1 // pred_check
      _
    $region19: #{mlpsps_forward.1} parent=1 // pred_check_branch
      %1516 = sbr.rel (0) target = $region21
    $region20: #{mlpsps_forward.1} parent=1 // pred_region
      %1517 = dma.done [#allocation5], 32
    $region21: #{mlpsps_forward.1} parent=1 // pred_fallthru
      _
    %1518 = vsyncpa [#allocation5], 1

</llo_original>
